<compile_context>
chip_gen: v7x
topology: tpu7x:2x2x1
jax: 0.10.0
libtpu: 0.0.40
codegen_flags: <defaults>
</compile_context>

<pallas_src>
import functools
import math

import jax
import jax.numpy as jnp
from jax.experimental import pallas as pl
from jax.experimental.pallas import tpu as pltpu


def _round_up(x, m):
    return ((x + m - 1) // m) * m


def _pick_tile(n_pad, want):
    """Largest multiple of 128 that divides n_pad and is <= want (n_pad % 128 == 0)."""
    t = min(want, n_pad)
    while n_pad % t:
        t -= 128
    return t


def _default_tiles(n_pad):
    """Chip-aware tiles: v5e/v6e (128 MiB VMEM) -> bigger dst tile to cut repeated q/v DMA;
    v7x / unknown -> conservative, and keep >=2 dst tiles so both TensorCores get work."""
    kind = ""
    try:
        kind = jax.devices()[0].device_kind.lower()
    except Exception:  # pragma: no cover
        pass
    if "v5" in kind or "v6" in kind:
        tile_dst, tile_src = 512, 512
    else:
        tile_dst, tile_src = 256, 512
    td = _pick_tile(n_pad, tile_dst)
    ts = _pick_tile(n_pad, tile_src)
    if n_pad // td < 2 and n_pad >= 256:     # megacore balance (v7x has 2 TCs)
        td = _pick_tile(n_pad, n_pad // 2)
    return td, ts


# ---------------------------------------------------------------------------
# Kernel 1: fused projection  acc = h @ [skip(PADH) | q*scale | k | v+ones]
#   emits q / k / v head-major (H, N, D[+1]) and skip node-major (N, PADH)
# ---------------------------------------------------------------------------
def _proj_kernel(H, D, PADH, h_ref, w_ref, b_ref, q_ref, k_ref, v_ref, skip_ref):
    HD = H * D
    acc = jnp.dot(h_ref[...], w_ref[...],
                  preferred_element_type=jnp.float32) + b_ref[...]   # (tp, W) f32
    skip_ref[...] = acc[:, :PADH]                                    # lane-dense PADH store
    qo, ko, vo = PADH, PADH + HD, PADH + 2 * HD
    for h in range(H):
        q_ref[h, :, :] = acc[:, qo + h * D: qo + (h + 1) * D].astype(jnp.bfloat16)
        k_ref[h, :, :] = acc[:, ko + h * D: ko + (h + 1) * D].astype(jnp.bfloat16)
        v_ref[h, :, :] = acc[:, vo + h * (D + 1): vo + (h + 1) * (D + 1)].astype(jnp.bfloat16)


# ---------------------------------------------------------------------------
# Kernel 2: masked edge-softmax attention + gating + LayerNorm + PReLU
#   grid = (dst tiles [parallel], src tiles [arbitrary, online-softmax reduction])
#   nnz_ref (scalar prefetch, SMEM): per-(dst,src)-tile occupancy -> skip empty tiles.
# ---------------------------------------------------------------------------
def _attn_kernel(num_heads, hd, d, padh,
                 nnz_ref, adj_ref, k_ref, q_ref, v_ref, skip_ref,
                 gamma_ref, beta_ref, wga_ref, wgb_ref, scal_ref,
                 out_ref, m_s, acc_s):
    i = pl.program_id(0)
    j = pl.program_id(1)

    @pl.when(j == 0)
    def _init():
        m_s[...] = jnp.full_like(m_s, -jnp.inf)
        acc_s[...] = jnp.zeros_like(acc_s)

    @pl.when(nnz_ref[i, j] > 0)        # skip tiles with no edges (graph sparsity)
    def _compute():
        # additive mask bias: 0 where edge u->v, -1e30 otherwise (one select on (td, ts))
        bias = jnp.where(adj_ref[...] > 0, jnp.float32(0.0), jnp.float32(-1e30))

        k = k_ref[...]                 # (H, td, D)   dst keys                     (bf16)
        q = q_ref[...]                 # (H, ts, D)   src queries, 1/sqrt(D) folded(bf16)
        v = v_ref[...]                 # (H, ts, D+1) src values + ones column     (bf16)

        # score[h, v_dst, u_src] = q_src[h,u] . k_dst[h,v]   (DGL u_dot_v('ft','ft'))
        s = jnp.einsum("hvd,hud->hvu", k, q,
                       preferred_element_type=jnp.float32) + bias[None, :, :]

        # online (flash-style) edge softmax over incoming edges of each dst node
        m_prev = m_s[...]
        m_new = jnp.maximum(m_prev, jnp.max(s, axis=-1, keepdims=True))
        alpha = jnp.exp(m_prev - m_new)
        p = jnp.exp((s - m_new).astype(jnp.bfloat16))        # bf16 exp, feeds MXU directly
        # ones column of v turns the last acc lane into the running softmax denominator
        acc_s[...] = alpha * acc_s[...] + jnp.einsum(
            "hvu,hud->hvd", p, v, preferred_element_type=jnp.float32)
        m_s[...] = m_new

    @pl.when(j == pl.num_programs(1) - 1)
    def _finalize():
        acc = acc_s[...]                                     # (H, td, D+1) f32
        l = acc[..., d:]                                     # (H, td, 1) denominator
        inv = pl.reciprocal(jnp.maximum(l, jnp.float32(1e-20)), approx=True)
        heads = acc[..., :d] * inv                           # (H, td, D)

        td = heads.shape[1]
        parts = [heads[h] for h in range(num_heads)]         # (td, HD), lane cols [h*D,(h+1)*D)
        if padh > hd:
            parts.append(jnp.zeros((td, padh - hd), jnp.float32))
        rst = jnp.concatenate(parts, axis=-1)                # (td, PADH) lane-dense

        skip = skip_ref[...]                                 # (td, PADH), pad cols are 0
        # gate(concat([skip, rst, skip - rst])) folded:
        #   logit = skip . (Wa + Wc) + rst . (Wb - Wc) + b_gate   (pad cols contribute 0)
        logit = jnp.sum(skip * wga_ref[...] + rst * wgb_ref[...],
                        axis=-1, keepdims=True) + scal_ref[0]
        gate = jax.nn.sigmoid(logit)
        rst = gate * skip + (1.0 - gate) * rst               # pad cols stay 0

        # LayerNorm over the HD real columns (E[x^2]-mu^2 form so zero pad cols are harmless)
        mu = jnp.sum(rst, axis=-1, keepdims=True) * (1.0 / hd)
        var = jnp.sum(rst * rst, axis=-1, keepdims=True) * (1.0 / hd) - mu * mu
        rst = (rst - mu) * jax.lax.rsqrt(var + 1e-5) * gamma_ref[...] + beta_ref[...]

        # PReLU (single learnable slope from SMEM); lane-dense PADH-wide store
        a = scal_ref[1]
        out_ref[...] = jnp.where(rst >= 0, rst, a * rst)


# ---------------------------------------------------------------------------
# Wrapper
# ---------------------------------------------------------------------------
def transformer_conv(feat, adj, params, *, num_heads, out_feats,
                     tile_dst=None, tile_src=None, tile_proj=512):
    """feat: (N, F_in) float32; adj: (N, N), adj[v, u] != 0 iff edge u -> v.
    NOTE: like the original module (allow_zero_in_degree=False), nodes with zero in-degree
    are not supported; add self-loops first."""
    N, f_in = feat.shape
    H, D = num_heads, out_feats
    HD = H * D
    PADH = _round_up(HD, 128)
    N_pad = _round_up(N, 128)

    td_def, ts_def = _default_tiles(N_pad)
    td = _pick_tile(N_pad, tile_dst) if tile_dst else td_def
    ts = _pick_tile(N_pad, tile_src) if tile_src else ts_def
    tp = _pick_tile(N_pad, tile_proj)

    scale = 1.0 / math.sqrt(D)

    # ---------------- host-side layout plumbing (small / one-shot) ----------------
    feat_p = jnp.zeros((N_pad, f_in), jnp.bfloat16).at[:N].set(feat.astype(jnp.bfloat16))

    # int8 adjacency mask + per-tile occupancy table (scalar-prefetched to SMEM)
    mask = jnp.zeros((N_pad, N_pad), jnp.bool_).at[:N, :N].set(adj > 0)
    adj_i8 = mask.astype(jnp.int8)
    ni, nj = N_pad // td, N_pad // ts
    tile_nnz = jnp.any(mask.reshape(ni, td, nj, ts), axis=(1, 3)).astype(jnp.int32)

    # fused projection weights: [ skip (PADH) | q*scale (HD) | k (HD) | v+ones (H*(D+1)) ]
    QO, KO, VO = PADH, PADH + HD, PADH + 2 * HD
    W = PADH + 2 * HD + H * (D + 1)
    w_f = jnp.zeros((f_in, W), jnp.float32)
    b_f = jnp.zeros((1, W), jnp.float32)
    w_f = w_f.at[:, 0:HD].set(params["ws"].T)
    b_f = b_f.at[:, 0:HD].set(params["bs"])
    w_f = w_f.at[:, QO:QO + HD].set(params["wq"].T * scale)       # fold 1/sqrt(D) into Wq
    b_f = b_f.at[:, QO:QO + HD].set(params["bq"] * scale)
    w_f = w_f.at[:, KO:KO + HD].set(params["wk"].T)
    b_f = b_f.at[:, KO:KO + HD].set(params["bk"])
    for h in range(H):
        c0 = VO + h * (D + 1)
        w_f = w_f.at[:, c0:c0 + D].set(params["wv"][h * D:(h + 1) * D, :].T)
        b_f = b_f.at[:, c0:c0 + D].set(params["bv"][:, h * D:(h + 1) * D])
        b_f = b_f.at[:, c0 + D].set(1.0)                          # ones column -> softmax denom
    w_f = w_f.astype(jnp.bfloat16)

    # folded, PADH-padded gate weights:  logit = skip.(Wa+Wc) + rst.(Wb-Wc) + b_gate
    wg = params["wg"]                                             # (1, 3*HD)
    wga = jnp.zeros((1, PADH), jnp.float32).at[:, :HD].set(wg[:, :HD] + wg[:, 2 * HD:])
    wgb = jnp.zeros((1, PADH), jnp.float32).at[:, :HD].set(wg[:, HD:2 * HD] - wg[:, 2 * HD:])
    gamma_p = jnp.zeros((1, PADH), jnp.float32).at[:, :HD].set(params["gamma"])
    beta_p = jnp.zeros((1, PADH), jnp.float32).at[:, :HD].set(params["beta"])
    scal = jnp.stack([params["bg"].reshape(()),
                      params["alpha"].reshape(())]).astype(jnp.float32)  # [b_gate, prelu]

    # ---------------- kernel 1: fused projections (head-major q/k/v, padded skip) ----------
    q_hm, k_hm, v_hm, skip_pad = pl.pallas_call(
        functools.partial(_proj_kernel, H, D, PADH),
        grid=(N_pad // tp,),
        in_specs=[
            pl.BlockSpec((tp, f_in), lambda i: (i, 0)),
            pl.BlockSpec((f_in, W), lambda i: (0, 0)),
            pl.BlockSpec((1, W), lambda i: (0, 0)),
        ],
        out_specs=(
            pl.BlockSpec((H, tp, D), lambda i: (0, i, 0)),
            pl.BlockSpec((H, tp, D), lambda i: (0, i, 0)),
            pl.BlockSpec((H, tp, D + 1), lambda i: (0, i, 0)),
            pl.BlockSpec((tp, PADH), lambda i: (i, 0)),
        ),
        out_shape=(
            jax.ShapeDtypeStruct((H, N_pad, D), jnp.bfloat16),       # q (scaled)
            jax.ShapeDtypeStruct((H, N_pad, D), jnp.bfloat16),       # k
            jax.ShapeDtypeStruct((H, N_pad, D + 1), jnp.bfloat16),   # v + ones column
            jax.ShapeDtypeStruct((N_pad, PADH), jnp.float32),        # skip (lane padded)
        ),
        compiler_params=pltpu.CompilerParams(dimension_semantics=("parallel",)),
    )(feat_p, w_f, b_f)

    # ---------------- kernel 2: attention + epilogue ----------------
    out_pad = pl.pallas_call(
        functools.partial(_attn_kernel, H, HD, D, PADH),
        grid_spec=pltpu.PrefetchScalarGridSpec(
            num_scalar_prefetch=1,
            grid=(ni, nj),
            in_specs=[
                pl.BlockSpec((td, ts), lambda i, j, nnz: (i, j)),          # int8 adjacency
                pl.BlockSpec((H, td, D), lambda i, j, nnz: (0, i, 0)),     # keys   (dst rows)
                pl.BlockSpec((H, ts, D), lambda i, j, nnz: (0, j, 0)),     # queries(src rows)
                pl.BlockSpec((H, ts, D + 1), lambda i, j, nnz: (0, j, 0)),  # values (src rows)
                pl.BlockSpec((td, PADH), lambda i, j, nnz: (i, 0)),        # skip   (dst rows)
                pl.BlockSpec((1, PADH), lambda i, j, nnz: (0, 0)),         # LN gamma
                pl.BlockSpec((1, PADH), lambda i, j, nnz: (0, 0)),         # LN beta
                pl.BlockSpec((1, PADH), lambda i, j, nnz: (0, 0)),         # gate Wa+Wc
                pl.BlockSpec((1, PADH), lambda i, j, nnz: (0, 0)),         # gate Wb-Wc
                pl.BlockSpec(memory_space=pltpu.MemorySpace.SMEM),         # [b_gate, prelu]
            ],
            out_specs=pl.BlockSpec((td, PADH), lambda i, j, nnz: (i, 0)),
            scratch_shapes=[
                pltpu.VMEM((H, td, 1), jnp.float32),        # running max
                pltpu.VMEM((H, td, D + 1), jnp.float32),    # running weighted sum (+denom)
            ],
        ),
        out_shape=jax.ShapeDtypeStruct((N_pad, PADH), jnp.float32),
        compiler_params=pltpu.CompilerParams(
            dimension_semantics=("parallel", "arbitrary")),
    )(tile_nnz, adj_i8, k_hm, q_hm, v_hm, skip_pad,
      gamma_p, beta_p, wga, wgb, scal)

    return out_pad[:N, :HD]


# ---------------------------------------------------------------------------
# Parameters (PyTorch nn.Linear / LayerNorm / PReLU default init)
# ---------------------------------------------------------------------------
def init_params(key, in_feats, out_feats, num_heads):
    HD = out_feats * num_heads
    keys = jax.random.split(key, 12)

    def lin(kw, kb, fan_in, fan_out):
        bound = 1.0 / math.sqrt(fan_in)
        w = jax.random.uniform(kw, (fan_out, fan_in), jnp.float32, -bound, bound)
        b = jax.random.uniform(kb, (1, fan_out), jnp.float32, -bound, bound)
        return w, b

    wq, bq = lin(keys[0], keys[1], in_feats, HD)
    wk, bk = lin(keys[2], keys[3], in_feats, HD)
    wv, bv = lin(keys[4], keys[5], in_feats, HD)
    ws, bs = lin(keys[6], keys[7], in_feats, HD)
    wg, bg = lin(keys[8], keys[9], 3 * HD, 1)

    return {
        "wq": wq, "bq": bq, "wk": wk, "bk": bk, "wv": wv, "bv": bv,
        "ws": ws, "bs": bs, "wg": wg, "bg": bg,
        "gamma": jnp.ones((1, HD), jnp.float32),
        "beta": jnp.zeros((1, HD), jnp.float32),
        "alpha": jnp.full((1, 1), 0.25, jnp.float32),   # nn.PReLU() default slope
    }


# ---------------------------------------------------------------------------
# Pure-JAX reference (same bf16 matmul-operand precision as the kernels)
# ---------------------------------------------------------------------------
def reference_forward(feat, adj, params, *, num_heads, out_feats):
    H, D = num_heads, out_feats
    bf = jnp.bfloat16
    hb = feat.astype(bf)

    def lin(w, b):
        return jnp.dot(hb, w.astype(bf).T, preferred_element_type=jnp.float32) + b

    q = lin(params["wq"], params["bq"])
    k = lin(params["wk"], params["bk"])
    v = lin(params["wv"], params["bv"])
    skip = lin(params["ws"], params["bs"])

    mask = adj > 0
    scale = 1.0 / math.sqrt(D)
    cols = []
    for h in range(H):
        qh = q[:, h * D:(h + 1) * D].astype(bf)
        kh = k[:, h * D:(h + 1) * D].astype(bf)
        vh = v[:, h * D:(h + 1) * D].astype(bf)
        s = jnp.dot(kh, qh.T, preferred_element_type=jnp.float32) * scale
        s = jnp.where(mask, s, -1e30)
        m = jnp.max(s, axis=-1, keepdims=True)
        e = jnp.where(mask, jnp.exp(s - m), 0.0)
        sa = e / jnp.maximum(jnp.sum(e, axis=-1, keepdims=True), 1e-20)
        cols.append(jnp.dot(sa.astype(bf), vh, preferred_element_type=jnp.float32))
    rst = jnp.concatenate(cols, axis=-1)

    cat = jnp.concatenate([skip, rst, skip - rst], axis=-1)
    gate = jax.nn.sigmoid(jnp.dot(cat, params["wg"].T) + params["bg"])
    rst = gate * skip + (1.0 - gate) * rst

    mu = jnp.mean(rst, axis=-1, keepdims=True)
    cen = rst - mu
    var = jnp.mean(cen * cen, axis=-1, keepdims=True)
    rst = cen * jax.lax.rsqrt(var + 1e-5) * params["gamma"] + params["beta"]
    return jnp.where(rst >= 0, rst, params["alpha"][0, 0] * rst)


if __name__ == "__main__":
    N = 16          # number of graph nodes (src == dst, homogeneous graph)
    IN_FEATS = 32
    OUT_FEATS = 16
    NUM_HEADS = 4

    key = jax.random.PRNGKey(0)
    k_feat, k_param = jax.random.split(key)

    feat = jax.random.normal(k_feat, (N, IN_FEATS), jnp.float32)

    # Deterministic graph: self-loops + a directed ring (u -> u+1), so in-degree >= 1.
    adj = jnp.eye(N, dtype=jnp.float32)
    src = jnp.arange(N)
    dst = (src + 1) % N
    adj = adj.at[dst, src].set(1.0)   # adj[v, u] = 1 for edge u -> v

    params = init_params(k_param, IN_FEATS, OUT_FEATS, NUM_HEADS)

    out = transformer_conv(feat, adj, params,
                           num_heads=NUM_HEADS, out_feats=OUT_FEATS)
    jax.block_until_ready(out)

    assert out.shape == (N, OUT_FEATS * NUM_HEADS)
    assert bool(jnp.all(jnp.isfinite(out)))

    ref = reference_forward(feat, adj, params,
                            num_heads=NUM_HEADS, out_feats=OUT_FEATS)
    err = float(jnp.max(jnp.abs(out - ref)))
    assert err < 5e-2, f"max abs err vs reference: {err}"

    print("KERNEL_OK")
</pallas_src>

<mosaic_0001>
module attributes {stable_mosaic.version = 11 : i64} {
  func.func @_proj_kernel(%arg0: i32, %arg1: memref<128x32xbf16, #tpu.memory_space<vmem>>, %arg2: memref<32x324xbf16, #tpu.memory_space<vmem>>, %arg3: memref<1x324xf32, #tpu.memory_space<vmem>>, %arg4: memref<4x128x16xbf16, #tpu.memory_space<vmem>>, %arg5: memref<4x128x16xbf16, #tpu.memory_space<vmem>>, %arg6: memref<4x128x17xbf16, #tpu.memory_space<vmem>>, %arg7: memref<128x128xf32, #tpu.memory_space<vmem>>) attributes {dimension_semantics = [#tpu.dimension_semantics<parallel>], iteration_bounds = array<i64: 1>, scalar_prefetch = 0 : i64, scratch_operands = 0 : i64, tpu.core_type = #tpu.core_type<tc>, window_params = [{transform_indices = @transform_0, window_bounds = array<i64: 128, 32>}, {pipeline_mode = #tpu.pipeline_mode<synchronous>, transform_indices = @transform_1, window_bounds = array<i64: 32, 324>}, {pipeline_mode = #tpu.pipeline_mode<synchronous>, transform_indices = @transform_2, window_bounds = array<i64: 1, 324>}, {transform_indices = @transform_3, window_bounds = array<i64: 4, 128, 16>}, {transform_indices = @transform_4, window_bounds = array<i64: 4, 128, 16>}, {transform_indices = @transform_5, window_bounds = array<i64: 4, 128, 17>}, {transform_indices = @transform_6, window_bounds = array<i64: 128, 128>}]} {
    %c0 = arith.constant 0 : index
    %c0_0 = arith.constant 0 : index
    %0 = vector.load %arg1[%c0, %c0_0] : memref<128x32xbf16, #tpu.memory_space<vmem>>, vector<128x32xbf16>
    %c0_1 = arith.constant 0 : index
    %c0_2 = arith.constant 0 : index
    %1 = vector.load %arg2[%c0_1, %c0_2] : memref<32x324xbf16, #tpu.memory_space<vmem>>, vector<32x324xbf16>
    %cst = arith.constant dense<0.000000e+00> : vector<128x324xf32>
    %2 = tpu.matmul %0, %1, %cst {dimension_numbers = #tpu.dot_dimension_numbers<[1], [0], [0], [1], [0, 0, 1, 1], [], []>} : vector<128x32xbf16>, vector<32x324xbf16>, vector<128x324xf32> -> vector<128x324xf32>
    %c0_3 = arith.constant 0 : index
    %c0_4 = arith.constant 0 : index
    %3 = vector.load %arg3[%c0_3, %c0_4] : memref<1x324xf32, #tpu.memory_space<vmem>>, vector<1x324xf32>
    %4 = vector.broadcast %3 : vector<1x324xf32> to vector<128x324xf32>
    %5 = arith.addf %2, %4 : vector<128x324xf32>
    %6 = vector.extract_strided_slice %5 {offsets = [0, 0], sizes = [128, 128], strides = [1, 1]} : vector<128x324xf32> to vector<128x128xf32>
    %c0_5 = arith.constant 0 : index
    %c0_6 = arith.constant 0 : index
    %7 = vector.load %arg7[%c0_5, %c0_6] : memref<128x128xf32, #tpu.memory_space<vmem>>, vector<128x128xf32>
    tpu.vector_store %arg7[%c0_5, %c0_6], %6 {strides = array<i32>} : memref<128x128xf32, #tpu.memory_space<vmem>>, vector<128x128xf32>,
    %8 = vector.extract_strided_slice %5 {offsets = [0, 128], sizes = [128, 16], strides = [1, 1]} : vector<128x324xf32> to vector<128x16xf32>
    %9 = arith.truncf %8 : vector<128x16xf32> to vector<128x16xbf16>
    %c0_7 = arith.constant 0 : index
    %c0_8 = arith.constant 0 : index
    %c0_9 = arith.constant 0 : index
    %10 = vector.load %arg4[%c0_7, %c0_8, %c0_9] : memref<4x128x16xbf16, #tpu.memory_space<vmem>>, vector<1x128x16xbf16>
    %11 = vector.shape_cast %10 : vector<1x128x16xbf16> to vector<128x16xbf16>
    %12 = vector.shape_cast %9 : vector<128x16xbf16> to vector<1x128x16xbf16>
    tpu.vector_store %arg4[%c0_7, %c0_8, %c0_9], %12 {strides = array<i32>} : memref<4x128x16xbf16, #tpu.memory_space<vmem>>, vector<1x128x16xbf16>,
    %13 = vector.extract_strided_slice %5 {offsets = [0, 192], sizes = [128, 16], strides = [1, 1]} : vector<128x324xf32> to vector<128x16xf32>
    %14 = arith.truncf %13 : vector<128x16xf32> to vector<128x16xbf16>
    %c0_10 = arith.constant 0 : index
    %c0_11 = arith.constant 0 : index
    %c0_12 = arith.constant 0 : index
    %15 = vector.load %arg5[%c0_10, %c0_11, %c0_12] : memref<4x128x16xbf16, #tpu.memory_space<vmem>>, vector<1x128x16xbf16>
    %16 = vector.shape_cast %15 : vector<1x128x16xbf16> to vector<128x16xbf16>
    %17 = vector.shape_cast %14 : vector<128x16xbf16> to vector<1x128x16xbf16>
    tpu.vector_store %arg5[%c0_10, %c0_11, %c0_12], %17 {strides = array<i32>} : memref<4x128x16xbf16, #tpu.memory_space<vmem>>, vector<1x128x16xbf16>,
    %18 = vector.extract_strided_slice %5 {offsets = [0, 256], sizes = [128, 17], strides = [1, 1]} : vector<128x324xf32> to vector<128x17xf32>
    %19 = arith.truncf %18 : vector<128x17xf32> to vector<128x17xbf16>
    %c0_13 = arith.constant 0 : index
    %c0_14 = arith.constant 0 : index
    %c0_15 = arith.constant 0 : index
    %20 = vector.load %arg6[%c0_13, %c0_14, %c0_15] : memref<4x128x17xbf16, #tpu.memory_space<vmem>>, vector<1x128x17xbf16>
    %21 = vector.shape_cast %20 : vector<1x128x17xbf16> to vector<128x17xbf16>
    %22 = vector.shape_cast %19 : vector<128x17xbf16> to vector<1x128x17xbf16>
    tpu.vector_store %arg6[%c0_13, %c0_14, %c0_15], %22 {strides = array<i32>} : memref<4x128x17xbf16, #tpu.memory_space<vmem>>, vector<1x128x17xbf16>,
    %23 = vector.extract_strided_slice %5 {offsets = [0, 144], sizes = [128, 16], strides = [1, 1]} : vector<128x324xf32> to vector<128x16xf32>
    %24 = arith.truncf %23 : vector<128x16xf32> to vector<128x16xbf16>
    %c1 = arith.constant 1 : index
    %c0_16 = arith.constant 0 : index
    %c0_17 = arith.constant 0 : index
    %25 = vector.load %arg4[%c1, %c0_16, %c0_17] : memref<4x128x16xbf16, #tpu.memory_space<vmem>>, vector<1x128x16xbf16>
    %26 = vector.shape_cast %25 : vector<1x128x16xbf16> to vector<128x16xbf16>
    %27 = vector.shape_cast %24 : vector<128x16xbf16> to vector<1x128x16xbf16>
    tpu.vector_store %arg4[%c1, %c0_16, %c0_17], %27 {strides = array<i32>} : memref<4x128x16xbf16, #tpu.memory_space<vmem>>, vector<1x128x16xbf16>,
    %28 = vector.extract_strided_slice %5 {offsets = [0, 208], sizes = [128, 16], strides = [1, 1]} : vector<128x324xf32> to vector<128x16xf32>
    %29 = arith.truncf %28 : vector<128x16xf32> to vector<128x16xbf16>
    %c1_18 = arith.constant 1 : index
    %c0_19 = arith.constant 0 : index
    %c0_20 = arith.constant 0 : index
    %30 = vector.load %arg5[%c1_18, %c0_19, %c0_20] : memref<4x128x16xbf16, #tpu.memory_space<vmem>>, vector<1x128x16xbf16>
    %31 = vector.shape_cast %30 : vector<1x128x16xbf16> to vector<128x16xbf16>
    %32 = vector.shape_cast %29 : vector<128x16xbf16> to vector<1x128x16xbf16>
    tpu.vector_store %arg5[%c1_18, %c0_19, %c0_20], %32 {strides = array<i32>} : memref<4x128x16xbf16, #tpu.memory_space<vmem>>, vector<1x128x16xbf16>,
    %33 = vector.extract_strided_slice %5 {offsets = [0, 273], sizes = [128, 17], strides = [1, 1]} : vector<128x324xf32> to vector<128x17xf32>
    %34 = arith.truncf %33 : vector<128x17xf32> to vector<128x17xbf16>
    %c1_21 = arith.constant 1 : index
    %c0_22 = arith.constant 0 : index
    %c0_23 = arith.constant 0 : index
    %35 = vector.load %arg6[%c1_21, %c0_22, %c0_23] : memref<4x128x17xbf16, #tpu.memory_space<vmem>>, vector<1x128x17xbf16>
    %36 = vector.shape_cast %35 : vector<1x128x17xbf16> to vector<128x17xbf16>
    %37 = vector.shape_cast %34 : vector<128x17xbf16> to vector<1x128x17xbf16>
    tpu.vector_store %arg6[%c1_21, %c0_22, %c0_23], %37 {strides = array<i32>} : memref<4x128x17xbf16, #tpu.memory_space<vmem>>, vector<1x128x17xbf16>,
    %38 = vector.extract_strided_slice %5 {offsets = [0, 160], sizes = [128, 16], strides = [1, 1]} : vector<128x324xf32> to vector<128x16xf32>
    %39 = arith.truncf %38 : vector<128x16xf32> to vector<128x16xbf16>
    %c2 = arith.constant 2 : index
    %c0_24 = arith.constant 0 : index
    %c0_25 = arith.constant 0 : index
    %40 = vector.load %arg4[%c2, %c0_24, %c0_25] : memref<4x128x16xbf16, #tpu.memory_space<vmem>>, vector<1x128x16xbf16>
    %41 = vector.shape_cast %40 : vector<1x128x16xbf16> to vector<128x16xbf16>
    %42 = vector.shape_cast %39 : vector<128x16xbf16> to vector<1x128x16xbf16>
    tpu.vector_store %arg4[%c2, %c0_24, %c0_25], %42 {strides = array<i32>} : memref<4x128x16xbf16, #tpu.memory_space<vmem>>, vector<1x128x16xbf16>,
    %43 = vector.extract_strided_slice %5 {offsets = [0, 224], sizes = [128, 16], strides = [1, 1]} : vector<128x324xf32> to vector<128x16xf32>
    %44 = arith.truncf %43 : vector<128x16xf32> to vector<128x16xbf16>
    %c2_26 = arith.constant 2 : index
    %c0_27 = arith.constant 0 : index
    %c0_28 = arith.constant 0 : index
    %45 = vector.load %arg5[%c2_26, %c0_27, %c0_28] : memref<4x128x16xbf16, #tpu.memory_space<vmem>>, vector<1x128x16xbf16>
    %46 = vector.shape_cast %45 : vector<1x128x16xbf16> to vector<128x16xbf16>
    %47 = vector.shape_cast %44 : vector<128x16xbf16> to vector<1x128x16xbf16>
    tpu.vector_store %arg5[%c2_26, %c0_27, %c0_28], %47 {strides = array<i32>} : memref<4x128x16xbf16, #tpu.memory_space<vmem>>, vector<1x128x16xbf16>,
    %48 = vector.extract_strided_slice %5 {offsets = [0, 290], sizes = [128, 17], strides = [1, 1]} : vector<128x324xf32> to vector<128x17xf32>
    %49 = arith.truncf %48 : vector<128x17xf32> to vector<128x17xbf16>
    %c2_29 = arith.constant 2 : index
    %c0_30 = arith.constant 0 : index
    %c0_31 = arith.constant 0 : index
    %50 = vector.load %arg6[%c2_29, %c0_30, %c0_31] : memref<4x128x17xbf16, #tpu.memory_space<vmem>>, vector<1x128x17xbf16>
    %51 = vector.shape_cast %50 : vector<1x128x17xbf16> to vector<128x17xbf16>
    %52 = vector.shape_cast %49 : vector<128x17xbf16> to vector<1x128x17xbf16>
    tpu.vector_store %arg6[%c2_29, %c0_30, %c0_31], %52 {strides = array<i32>} : memref<4x128x17xbf16, #tpu.memory_space<vmem>>, vector<1x128x17xbf16>,
    %53 = vector.extract_strided_slice %5 {offsets = [0, 176], sizes = [128, 16], strides = [1, 1]} : vector<128x324xf32> to vector<128x16xf32>
    %54 = arith.truncf %53 : vector<128x16xf32> to vector<128x16xbf16>
    %c3 = arith.constant 3 : index
    %c0_32 = arith.constant 0 : index
    %c0_33 = arith.constant 0 : index
    %55 = vector.load %arg4[%c3, %c0_32, %c0_33] : memref<4x128x16xbf16, #tpu.memory_space<vmem>>, vector<1x128x16xbf16>
    %56 = vector.shape_cast %55 : vector<1x128x16xbf16> to vector<128x16xbf16>
    %57 = vector.shape_cast %54 : vector<128x16xbf16> to vector<1x128x16xbf16>
    tpu.vector_store %arg4[%c3, %c0_32, %c0_33], %57 {strides = array<i32>} : memref<4x128x16xbf16, #tpu.memory_space<vmem>>, vector<1x128x16xbf16>,
    %58 = vector.extract_strided_slice %5 {offsets = [0, 240], sizes = [128, 16], strides = [1, 1]} : vector<128x324xf32> to vector<128x16xf32>
    %59 = arith.truncf %58 : vector<128x16xf32> to vector<128x16xbf16>
    %c3_34 = arith.constant 3 : index
    %c0_35 = arith.constant 0 : index
    %c0_36 = arith.constant 0 : index
    %60 = vector.load %arg5[%c3_34, %c0_35, %c0_36] : memref<4x128x16xbf16, #tpu.memory_space<vmem>>, vector<1x128x16xbf16>
    %61 = vector.shape_cast %60 : vector<1x128x16xbf16> to vector<128x16xbf16>
    %62 = vector.shape_cast %59 : vector<128x16xbf16> to vector<1x128x16xbf16>
    tpu.vector_store %arg5[%c3_34, %c0_35, %c0_36], %62 {strides = array<i32>} : memref<4x128x16xbf16, #tpu.memory_space<vmem>>, vector<1x128x16xbf16>,
    %63 = vector.extract_strided_slice %5 {offsets = [0, 307], sizes = [128, 17], strides = [1, 1]} : vector<128x324xf32> to vector<128x17xf32>
    %64 = arith.truncf %63 : vector<128x17xf32> to vector<128x17xbf16>
    %c3_37 = arith.constant 3 : index
    %c0_38 = arith.constant 0 : index
    %c0_39 = arith.constant 0 : index
    %65 = vector.load %arg6[%c3_37, %c0_38, %c0_39] : memref<4x128x17xbf16, #tpu.memory_space<vmem>>, vector<1x128x17xbf16>
    %66 = vector.shape_cast %65 : vector<1x128x17xbf16> to vector<128x17xbf16>
    %67 = vector.shape_cast %64 : vector<128x17xbf16> to vector<1x128x17xbf16>
    tpu.vector_store %arg6[%c3_37, %c0_38, %c0_39], %67 {strides = array<i32>} : memref<4x128x17xbf16, #tpu.memory_space<vmem>>, vector<1x128x17xbf16>,
    return
  }
  func.func @transform_0(%arg0: i32) -> (i32, i32) {
    %c0_i32 = arith.constant 0 : i32
    %c0_i32_0 = arith.constant 0 : i32
    return %arg0, %c0_i32 : i32, i32
  }
  func.func @transform_1(%arg0: i32) -> (i32, i32) {
    %c0_i32 = arith.constant 0 : i32
    %c0_i32_0 = arith.constant 0 : i32
    %c0_i32_1 = arith.constant 0 : i32
    return %c0_i32, %c0_i32_0 : i32, i32
  }
  func.func @transform_2(%arg0: i32) -> (i32, i32) {
    %c0_i32 = arith.constant 0 : i32
    %c0_i32_0 = arith.constant 0 : i32
    %c0_i32_1 = arith.constant 0 : i32
    return %c0_i32, %c0_i32_0 : i32, i32
  }
  func.func @transform_3(%arg0: i32) -> (i32, i32, i32) {
    %c0_i32 = arith.constant 0 : i32
    %c0_i32_0 = arith.constant 0 : i32
    %c0_i32_1 = arith.constant 0 : i32
    return %c0_i32, %arg0, %c0_i32_0 : i32, i32, i32
  }
  func.func @transform_4(%arg0: i32) -> (i32, i32, i32) {
    %c0_i32 = arith.constant 0 : i32
    %c0_i32_0 = arith.constant 0 : i32
    %c0_i32_1 = arith.constant 0 : i32
    return %c0_i32, %arg0, %c0_i32_0 : i32, i32, i32
  }
  func.func @transform_5(%arg0: i32) -> (i32, i32, i32) {
    %c0_i32 = arith.constant 0 : i32
    %c0_i32_0 = arith.constant 0 : i32
    %c0_i32_1 = arith.constant 0 : i32
    return %c0_i32, %arg0, %c0_i32_0 : i32, i32, i32
  }
  func.func @transform_6(%arg0: i32) -> (i32, i32) {
    %c0_i32 = arith.constant 0 : i32
    %c0_i32_0 = arith.constant 0 : i32
    return %arg0, %c0_i32 : i32, i32
  }
}

</mosaic_0001>

<llo_original>
// kernel: tpu_custom_call.1
$region0: #{tpu_custom_call.1}
  #allocation0 [shape = 'u32[]', space=smem, size = 0x4, offset = 0x4, fixed_abs, tag = 'smem constant byte address 0x4 - core index']
  #allocation1 [shape = 'u32[144,128]{1,0:T(1,128)}', space=vmem, size = 0x12000, scoped, tag = 'internal scratch']
  %s0 = inlined_call_operand.vmem [shape: bf16[128,32], index: 0, kind: input, shape index: {}]
  %s1 = inlined_call_operand.vmem [shape: bf16[32,324], index: 1, kind: input, shape index: {}]
  %s2 = inlined_call_operand.vmem [shape: f32[1,324], index: 2, kind: input, shape index: {}]
  %s3 = inlined_call_operand.vmem [shape: bf16[4,128,16], index: 3, kind: output, shape index: {0}]
  %s4 = inlined_call_operand.vmem [shape: bf16[4,128,16], index: 4, kind: output, shape index: {1}]
  %s5 = inlined_call_operand.vmem [shape: bf16[4,128,17], index: 5, kind: output, shape index: {2}]
  %s6 = inlined_call_operand.hbm [shape: f32[128,128], index: 6, kind: output, shape index: {3}]
  %7 = xla_tuple %s3, %s4, %s5, %s6
  %s8 = sld [smem:[#allocation0]]
  $region46: #{tpu_custom_call.1} parent=0
    _
  %s10 = ssub.s32 1, %s8
  %s11 = scalar_select 0, %s10, %s8
  $region1: #{tpu_custom_call.1} parent=0
    #allocation2 [shape = 'u8[65536]{0}', space=vmem, size = 0x10000, scoped, tag = 'output window, operand 3, single buffered']
    #allocation3 [shape = 's32[1]{0}', space=sflag, size = 0x4, scoped, tag = 'scoped memory for tpu_custom_call.1']
    %12 = vsyncpa [#allocation3], 0
    // Predicated region
    $region2: #{tpu_custom_call.1} parent=1 // pred_check
      _
    $region3: #{tpu_custom_call.1} parent=1 // pred_check_branch
      %14 = sbr.rel (0) target = $region5
    $region4: #{tpu_custom_call.1} parent=1 // pred_region
      _
    $region5: #{tpu_custom_call.1} parent=1 // pred_fallthru
      _
    // Predicated region
    $region6: #{tpu_custom_call.1} parent=1 // pred_check
      _
    $region7: #{tpu_custom_call.1} parent=1 // pred_check_branch
      %16 = sbr.rel (0) target = $region9
    $region8: #{tpu_custom_call.1} parent=1 // pred_region
      _
    $region9: #{tpu_custom_call.1} parent=1 // pred_fallthru
      _
    // Predicated region
    $region10: #{tpu_custom_call.1} parent=1 // pred_check
      _
    $region11: #{tpu_custom_call.1} parent=1 // pred_check_branch
      %18 = sbr.rel (0) target = $region13
    $region12: #{tpu_custom_call.1} parent=1 // pred_region
      _
    $region13: #{tpu_custom_call.1} parent=1 // pred_fallthru
      _
    %v20 = vld [vmem:[%s0] sm:$0xf]
    %v21 = vld [vmem:[%s0 + $0x4] sm:$0xf]
    %v22 = vld [vmem:[%s0 + $0x8] sm:$0xf]
    %v23 = vld [vmem:[%s0 + $0xc] sm:$0xf]
    %v24 = vld [vmem:[%s0 + $0x10] sm:$0xf]
    %v25 = vld [vmem:[%s0 + $0x14] sm:$0xf]
    %v26 = vld [vmem:[%s0 + $0x18] sm:$0xf]
    %v27 = vld [vmem:[%s0 + $0x1c] sm:$0xf]
    %v28 = vld [vmem:[%s0 + $0x20] sm:$0xf]
    %v29 = vld [vmem:[%s0 + $0x24] sm:$0xf]
    %v30 = vld [vmem:[%s0 + $0x28] sm:$0xf]
    %v31 = vld [vmem:[%s0 + $0x2c] sm:$0xf]
    %v32 = vld [vmem:[%s0 + $0x30] sm:$0xf]
    %v33 = vld [vmem:[%s0 + $0x34] sm:$0xf]
    %v34 = vld [vmem:[%s0 + $0x38] sm:$0xf]
    %v35 = vld [vmem:[%s0 + $0x3c] sm:$0xf]
    %v36 = vld [vmem:[%s1] sm:$0xff]
    %v37 = vld [vmem:[%s1 + $0x8] sm:$0xf]
    %v38 = vld [vmem:[%s1 + $0xc] sm:$0xff]
    %v39 = vld [vmem:[%s1 + $0x14] sm:$0xf]
    %v40 = vld [vmem:[%s1 + $0x18] sm:$0xff]
    %v41 = vld [vmem:[%s1 + $0x20] sm:$0xf]
    %v42 = vld [vmem:[%s1 + $0x24] sm:$0xff]
    %v43 = vld [vmem:[%s1 + $0x2c] sm:$0xf]
    %v44 = vld [vmem:[%s2] sm:$0x7]
    %v46 = vlaneseq
    %v47 = vshrl.u32 %v46, 7
    %v48 = vsub.s32 0, %v47
    %v49 = vrot.slane %v44, %v48
    %v50 = vlaneseq
    %v51 = vshrl.u32 %v50, 7
    %v52 = vsub.s32 1, %v51
    %v53 = vrot.slane %v44, %v52
    %v54 = vlaneseq
    %v55 = vshrl.u32 %v54, 7
    %v56 = vsub.s32 2, %v55
    %v57 = vrot.slane %v44, %v56
    %v77 = vunpack.c.l.b16 %v20
    %v78 = vunpack.c.l.b16 %v21
    %v79 = vunpack.c.l.b16 %v22
    %v80 = vunpack.c.l.b16 %v23
    %v81 = vunpack.c.l.b16 %v24
    %v82 = vunpack.c.l.b16 %v25
    %v83 = vunpack.c.l.b16 %v26
    %v84 = vunpack.c.l.b16 %v27
    %v85 = vunpack.c.l.b16 %v28
    %v86 = vunpack.c.l.b16 %v29
    %v87 = vunpack.c.l.b16 %v30
    %v88 = vunpack.c.l.b16 %v31
    %v89 = vunpack.c.l.b16 %v32
    %v90 = vunpack.c.l.b16 %v33
    %v91 = vunpack.c.l.b16 %v34
    %v92 = vunpack.c.l.b16 %v35
    %v93 = vpack.c.b16 %v78, %v77
    %v94 = vpack.c.b16 %v80, %v79
    %v95 = vpack.c.b16 %v82, %v81
    %v96 = vpack.c.b16 %v84, %v83
    %v97 = vpack.c.b16 %v86, %v85
    %v98 = vpack.c.b16 %v88, %v87
    %v99 = vpack.c.b16 %v90, %v89
    %v100 = vpack.c.b16 %v92, %v91
    %v109 = vunpack.c.l.b16 %v36
    %v110 = vunpack.c.h.b16 %v36
    %v111 = vunpack.c.l.b16 %v37
    %v112 = vunpack.c.l.b16 %v38
    %v113 = vunpack.c.h.b16 %v38
    %v114 = vunpack.c.l.b16 %v39
    %v115 = vunpack.c.l.b16 %v40
    %v116 = vunpack.c.h.b16 %v40
    %v117 = vunpack.c.l.b16 %v41
    %v118 = vunpack.c.l.b16 %v42
    %v119 = vunpack.c.h.b16 %v42
    %v120 = vunpack.c.l.b16 %v43
    %v121 = vpack.c.b16 %v112, %v109
    %v122 = vpack.c.b16 %v113, %v110
    %v123 = vpack.c.b16 %v114, %v111
    %v124 = vpack.c.b16 %v118, %v115
    %v125 = vpack.c.b16 %v119, %v116
    %v126 = vpack.c.b16 %v120, %v117
    %vm133 = vcmask 261120
    %v135 = vsel %vm133, %v93, 0
    %v138 = vsel %vm133, %v94, 0
    %v141 = vsel %vm133, %v95, 0
    %v144 = vsel %vm133, %v96, 0
    %v147 = vsel %vm133, %v97, 0
    %v150 = vsel %vm133, %v98, 0
    %v153 = vsel %vm133, %v99, 0
    %v156 = vsel %vm133, %v100, 0
    %158 = vmatprep.subr.bf16.mxu0 %v122
    %159 = vmatpush1.bf16.msra.mxu0 %v121
    %160 = vmatprep.subr.bf16.mxu0 %v125
    %161 = vmatpush1.bf16.msra.mxu0 %v124
    %162 = vmatprep.subr.bf16.mxu0 0
    %163 = vmatpush1.bf16.msra.mxu0 0
    %164 = vmatprep.subr.bf16.mxu0 0
    %165 = vmatpush1.bf16.msra.mxu0 0
    %166 = vmatprep.subr.bf16.mxu0 0
    %167 = vmatpush1.bf16.msra.mxu0 0
    %168 = vmatprep.subr.bf16.mxu0 0
    %169 = vmatpush1.bf16.msra.mxu0 0
    %170 = vmatprep.subr.bf16.mxu0 0
    %171 = vmatpush1.bf16.msra.mxu0 0
    %172 = vmatprep.subr.bf16.mxu0 0
    %173 = vmatpush1.bf16.msra.mxu0 0
    %174 = vmatprep.subr.bf16.mxu0 0
    %175 = vmatpush1.bf16.msra.mxu0 0
    %176 = vmatprep.subr.bf16.mxu0 0
    %177 = vmatpush1.bf16.msra.mxu0 0
    %178 = vmatprep.subr.bf16.mxu0 0
    %179 = vmatpush1.bf16.msra.mxu0 0
    %180 = vmatprep.subr.bf16.mxu0 0
    %181 = vmatpush1.bf16.msra.mxu0 0
    %182 = vmatprep.subr.bf16.mxu0 0
    %183 = vmatpush1.bf16.msra.mxu0 0
    %184 = vmatprep.subr.bf16.mxu0 0
    %185 = vmatpush1.bf16.msra.mxu0 0
    %186 = vmatprep.subr.bf16.mxu0 0
    %187 = vmatpush1.bf16.msra.mxu0 0
    %188 = vmatprep.subr.bf16.mxu0 0
    %189 = vmatpush1.bf16.msra.mxu0 0
    %190 = vmatprep.mubr.bf16.mxu0 0
    %191 = vmatmul.mubr.bf16.gmra.mrb[0].mxu0 %v135
    %v192 = vpop.f32.mrb[0].mxu0
    %v193 = vadd.f32 %v49, %v192
    %v194 = vpop.f32.mrb[0].mxu0
    %v195 = vadd.f32 %v53, %v194
    %v196 = vpop.f32.mrb[0].mxu0
    %v197 = vadd.f32 %v49, %v196
    %v198 = vpop.f32.mrb[0].mxu0
    %v199 = vadd.f32 %v53, %v198
    %200 = vmatprep.mubr.bf16.mxu0 0
    %201 = vmatmul.mubr.bf16.gmra.mrb[0].mxu0 %v138
    %v202 = vpop.f32.mrb[0].mxu0
    %v203 = vadd.f32 %v49, %v202
    %v204 = vpop.f32.mrb[0].mxu0
    %v205 = vadd.f32 %v53, %v204
    %v206 = vpop.f32.mrb[0].mxu0
    %v207 = vadd.f32 %v49, %v206
    %v208 = vpop.f32.mrb[0].mxu0
    %v209 = vadd.f32 %v53, %v208
    %210 = vmatprep.mubr.bf16.mxu0 0
    %211 = vmatmul.mubr.bf16.gmra.mrb[0].mxu0 %v141
    %v212 = vpop.f32.mrb[0].mxu0
    %v213 = vadd.f32 %v49, %v212
    %v214 = vpop.f32.mrb[0].mxu0
    %v215 = vadd.f32 %v53, %v214
    %v216 = vpop.f32.mrb[0].mxu0
    %v217 = vadd.f32 %v49, %v216
    %v218 = vpop.f32.mrb[0].mxu0
    %v219 = vadd.f32 %v53, %v218
    %220 = vmatprep.mubr.bf16.mxu0 0
    %221 = vmatmul.mubr.bf16.gmra.mrb[0].mxu0 %v144
    %v222 = vpop.f32.mrb[0].mxu0
    %v223 = vadd.f32 %v49, %v222
    %v224 = vpop.f32.mrb[0].mxu0
    %v225 = vadd.f32 %v53, %v224
    %v226 = vpop.f32.mrb[0].mxu0
    %v227 = vadd.f32 %v49, %v226
    %v228 = vpop.f32.mrb[0].mxu0
    %v229 = vadd.f32 %v53, %v228
    %230 = vmatprep.mubr.bf16.mxu0 0
    %231 = vmatmul.mubr.bf16.gmra.mrb[0].mxu0 %v147
    %v232 = vpop.f32.mrb[0].mxu0
    %v233 = vadd.f32 %v49, %v232
    %v234 = vpop.f32.mrb[0].mxu0
    %v235 = vadd.f32 %v53, %v234
    %v236 = vpop.f32.mrb[0].mxu0
    %v237 = vadd.f32 %v49, %v236
    %v238 = vpop.f32.mrb[0].mxu0
    %v239 = vadd.f32 %v53, %v238
    %240 = vmatprep.mubr.bf16.mxu0 0
    %241 = vmatmul.mubr.bf16.gmra.mrb[0].mxu0 %v150
    %v242 = vpop.f32.mrb[0].mxu0
    %v243 = vadd.f32 %v49, %v242
    %v244 = vpop.f32.mrb[0].mxu0
    %v245 = vadd.f32 %v53, %v244
    %v246 = vpop.f32.mrb[0].mxu0
    %v247 = vadd.f32 %v49, %v246
    %v248 = vpop.f32.mrb[0].mxu0
    %v249 = vadd.f32 %v53, %v248
    %250 = vmatprep.mubr.bf16.mxu0 0
    %251 = vmatmul.mubr.bf16.gmra.mrb[0].mxu0 %v153
    %v252 = vpop.f32.mrb[0].mxu0
    %v253 = vadd.f32 %v49, %v252
    %v254 = vpop.f32.mrb[0].mxu0
    %v255 = vadd.f32 %v53, %v254
    %v256 = vpop.f32.mrb[0].mxu0
    %v257 = vadd.f32 %v49, %v256
    %v258 = vpop.f32.mrb[0].mxu0
    %v259 = vadd.f32 %v53, %v258
    %260 = vmatprep.mubr.bf16.mxu0 0
    %261 = vmatmul.mubr.bf16.gmra.mrb[0].mxu0 %v156
    %v262 = vpop.f32.mrb[0].mxu0
    %v263 = vadd.f32 %v49, %v262
    %v264 = vpop.f32.mrb[0].mxu0
    %v265 = vadd.f32 %v53, %v264
    %v266 = vpop.f32.mrb[0].mxu0
    %v267 = vadd.f32 %v49, %v266
    %v268 = vpop.f32.mrb[0].mxu0
    %v269 = vadd.f32 %v53, %v268
    %270 = vdwg.mxu0
    %271 = vmatprep.subr.bf16.mxu0 0
    %272 = vmatpush1.bf16.msra.mxu0 %v123
    %273 = vmatprep.subr.bf16.mxu0 0
    %274 = vmatpush1.bf16.msra.mxu0 %v126
    %275 = vmatprep.subr.bf16.mxu0 0
    %276 = vmatpush1.bf16.msra.mxu0 0
    %277 = vmatprep.subr.bf16.mxu0 0
    %278 = vmatpush1.bf16.msra.mxu0 0
    %279 = vmatprep.subr.bf16.mxu0 0
    %280 = vmatpush1.bf16.msra.mxu0 0
    %281 = vmatprep.subr.bf16.mxu0 0
    %282 = vmatpush1.bf16.msra.mxu0 0
    %283 = vmatprep.subr.bf16.mxu0 0
    %284 = vmatpush1.bf16.msra.mxu0 0
    %285 = vmatprep.subr.bf16.mxu0 0
    %286 = vmatpush1.bf16.msra.mxu0 0
    %287 = vmatprep.subr.bf16.mxu0 0
    %288 = vmatpush1.bf16.msra.mxu0 0
    %289 = vmatprep.subr.bf16.mxu0 0
    %290 = vmatpush1.bf16.msra.mxu0 0
    %291 = vmatprep.subr.bf16.mxu0 0
    %292 = vmatpush1.bf16.msra.mxu0 0
    %293 = vmatprep.subr.bf16.mxu0 0
    %294 = vmatpush1.bf16.msra.mxu0 0
    %295 = vmatprep.subr.bf16.mxu0 0
    %296 = vmatpush1.bf16.msra.mxu0 0
    %297 = vmatprep.subr.bf16.mxu0 0
    %298 = vmatpush1.bf16.msra.mxu0 0
    %299 = vmatprep.subr.bf16.mxu0 0
    %300 = vmatpush1.bf16.msra.mxu0 0
    %301 = vmatprep.subr.bf16.mxu0 0
    %302 = vmatpush1.bf16.msra.mxu0 0
    %303 = vmatprep.mubr.bf16.mxu0 0
    %304 = vmatmul.mubr.bf16.gmra.mrb[0].mxu0 %v135
    %v305 = vpop.f32.mrb[0].mxu0
    %v306 = vadd.f32 %v57, %v305
    %v307 = vpop.f32.mrb[0].mxu0
    %v308 = vpop.f32.mrb[0].mxu0
    %v309 = vadd.f32 %v57, %v308
    %v310 = vpop.f32.mrb[0].mxu0
    %311 = vmatprep.mubr.bf16.mxu0 0
    %312 = vmatmul.mubr.bf16.gmra.mrb[0].mxu0 %v138
    %v313 = vpop.f32.mrb[0].mxu0
    %v314 = vadd.f32 %v57, %v313
    %v315 = vpop.f32.mrb[0].mxu0
    %v316 = vpop.f32.mrb[0].mxu0
    %v317 = vadd.f32 %v57, %v316
    %v318 = vpop.f32.mrb[0].mxu0
    %319 = vmatprep.mubr.bf16.mxu0 0
    %320 = vmatmul.mubr.bf16.gmra.mrb[0].mxu0 %v141
    %v321 = vpop.f32.mrb[0].mxu0
    %v322 = vadd.f32 %v57, %v321
    %v323 = vpop.f32.mrb[0].mxu0
    %v324 = vpop.f32.mrb[0].mxu0
    %v325 = vadd.f32 %v57, %v324
    %v326 = vpop.f32.mrb[0].mxu0
    %327 = vmatprep.mubr.bf16.mxu0 0
    %328 = vmatmul.mubr.bf16.gmra.mrb[0].mxu0 %v144
    %v329 = vpop.f32.mrb[0].mxu0
    %v330 = vadd.f32 %v57, %v329
    %v331 = vpop.f32.mrb[0].mxu0
    %v332 = vpop.f32.mrb[0].mxu0
    %v333 = vadd.f32 %v57, %v332
    %v334 = vpop.f32.mrb[0].mxu0
    %335 = vmatprep.mubr.bf16.mxu0 0
    %336 = vmatmul.mubr.bf16.gmra.mrb[0].mxu0 %v147
    %v337 = vpop.f32.mrb[0].mxu0
    %v338 = vadd.f32 %v57, %v337
    %v339 = vpop.f32.mrb[0].mxu0
    %v340 = vpop.f32.mrb[0].mxu0
    %v341 = vadd.f32 %v57, %v340
    %v342 = vpop.f32.mrb[0].mxu0
    %343 = vmatprep.mubr.bf16.mxu0 0
    %344 = vmatmul.mubr.bf16.gmra.mrb[0].mxu0 %v150
    %v345 = vpop.f32.mrb[0].mxu0
    %v346 = vadd.f32 %v57, %v345
    %v347 = vpop.f32.mrb[0].mxu0
    %v348 = vpop.f32.mrb[0].mxu0
    %v349 = vadd.f32 %v57, %v348
    %v350 = vpop.f32.mrb[0].mxu0
    %351 = vmatprep.mubr.bf16.mxu0 0
    %352 = vmatmul.mubr.bf16.gmra.mrb[0].mxu0 %v153
    %v353 = vpop.f32.mrb[0].mxu0
    %v354 = vadd.f32 %v57, %v353
    %v355 = vpop.f32.mrb[0].mxu0
    %v356 = vpop.f32.mrb[0].mxu0
    %v357 = vadd.f32 %v57, %v356
    %v358 = vpop.f32.mrb[0].mxu0
    %359 = vmatprep.mubr.bf16.mxu0 0
    %360 = vmatmul.mubr.bf16.gmra.mrb[0].mxu0 %v156
    %v361 = vpop.f32.mrb[0].mxu0
    %v362 = vadd.f32 %v57, %v361
    %v363 = vpop.f32.mrb[0].mxu0
    %v364 = vpop.f32.mrb[0].mxu0
    %v365 = vadd.f32 %v57, %v364
    %v366 = vpop.f32.mrb[0].mxu0
    %367 = vdwg.mxu0
    %368 = vst [vmem:[#allocation2] sm:$0xff] %v193
    %369 = vst [vmem:[#allocation2 + $0x8] sm:$0xff] %v197
    %370 = vst [vmem:[#allocation2 + $0x10] sm:$0xff] %v203
    %371 = vst [vmem:[#allocation2 + $0x18] sm:$0xff] %v207
    %372 = vst [vmem:[#allocation2 + $0x20] sm:$0xff] %v213
    %373 = vst [vmem:[#allocation2 + $0x28] sm:$0xff] %v217
    %374 = vst [vmem:[#allocation2 + $0x30] sm:$0xff] %v223
    %375 = vst [vmem:[#allocation2 + $0x38] sm:$0xff] %v227
    %376 = vst [vmem:[#allocation2 + $0x40] sm:$0xff] %v233
    %377 = vst [vmem:[#allocation2 + $0x48] sm:$0xff] %v237
    %378 = vst [vmem:[#allocation2 + $0x50] sm:$0xff] %v243
    %379 = vst [vmem:[#allocation2 + $0x58] sm:$0xff] %v247
    %380 = vst [vmem:[#allocation2 + $0x60] sm:$0xff] %v253
    %381 = vst [vmem:[#allocation2 + $0x68] sm:$0xff] %v257
    %382 = vst [vmem:[#allocation2 + $0x70] sm:$0xff] %v263
    %383 = vst [vmem:[#allocation2 + $0x78] sm:$0xff] %v267
    %v384 = vpack.c.bf16 %v199, %v195
    %v385 = vpack.c.bf16 %v209, %v205
    %v386 = vpack.c.bf16 %v219, %v215
    %v387 = vpack.c.bf16 %v229, %v225
    %v388 = vpack.c.bf16 %v239, %v235
    %v389 = vpack.c.bf16 %v249, %v245
    %v390 = vpack.c.bf16 %v259, %v255
    %v391 = vpack.c.bf16 %v269, %v265
    %v400 = vunpack.c.l.b16 %v384
    %v401 = vunpack.c.h.b16 %v384
    %v402 = vunpack.c.l.b16 %v385
    %v403 = vunpack.c.h.b16 %v385
    %v404 = vunpack.c.l.b16 %v386
    %v405 = vunpack.c.h.b16 %v386
    %v406 = vunpack.c.l.b16 %v387
    %v407 = vunpack.c.h.b16 %v387
    %v408 = vunpack.c.l.b16 %v388
    %v409 = vunpack.c.h.b16 %v388
    %v410 = vunpack.c.l.b16 %v389
    %v411 = vunpack.c.h.b16 %v389
    %v412 = vunpack.c.l.b16 %v390
    %v413 = vunpack.c.h.b16 %v390
    %v414 = vunpack.c.l.b16 %v391
    %v415 = vunpack.c.h.b16 %v391
    %v416 = vpack.c.b16 %v400, %v400
    %v417 = vpack.c.b16 %v401, %v401
    %v418 = vpack.c.b16 %v402, %v402
    %v419 = vpack.c.b16 %v403, %v403
    %v420 = vpack.c.b16 %v404, %v404
    %v421 = vpack.c.b16 %v405, %v405
    %v422 = vpack.c.b16 %v406, %v406
    %v423 = vpack.c.b16 %v407, %v407
    %v424 = vpack.c.b16 %v408, %v408
    %v425 = vpack.c.b16 %v409, %v409
    %v426 = vpack.c.b16 %v410, %v410
    %v427 = vpack.c.b16 %v411, %v411
    %v428 = vpack.c.b16 %v412, %v412
    %v429 = vpack.c.b16 %v413, %v413
    %v430 = vpack.c.b16 %v414, %v414
    %v431 = vpack.c.b16 %v415, %v415
    %vm448 = vcmask 125952
    %449 = vst.msk [vmem:[%s3] sm:$0xf] %vm448, %v416
    %450 = vst.msk [vmem:[%s3 + $0x4] sm:$0xf] %vm448, %v417
    %451 = vst.msk [vmem:[%s3 + $0x8] sm:$0xf] %vm448, %v418
    %452 = vst.msk [vmem:[%s3 + $0xc] sm:$0xf] %vm448, %v419
    %453 = vst.msk [vmem:[%s3 + $0x10] sm:$0xf] %vm448, %v420
    %454 = vst.msk [vmem:[%s3 + $0x14] sm:$0xf] %vm448, %v421
    %455 = vst.msk [vmem:[%s3 + $0x18] sm:$0xf] %vm448, %v422
    %456 = vst.msk [vmem:[%s3 + $0x1c] sm:$0xf] %vm448, %v423
    %457 = vst.msk [vmem:[%s3 + $0x20] sm:$0xf] %vm448, %v424
    %458 = vst.msk [vmem:[%s3 + $0x24] sm:$0xf] %vm448, %v425
    %459 = vst.msk [vmem:[%s3 + $0x28] sm:$0xf] %vm448, %v426
    %460 = vst.msk [vmem:[%s3 + $0x2c] sm:$0xf] %vm448, %v427
    %461 = vst.msk [vmem:[%s3 + $0x30] sm:$0xf] %vm448, %v428
    %462 = vst.msk [vmem:[%s3 + $0x34] sm:$0xf] %vm448, %v429
    %463 = vst.msk [vmem:[%s3 + $0x38] sm:$0xf] %vm448, %v430
    %464 = vst.msk [vmem:[%s3 + $0x3c] sm:$0xf] %vm448, %v431
    %465 = vrot.lane.b32.xlu0 %v416, 64
    %v466 = vpop.permute.xlu0 %465
    %467 = vrot.lane.b32.xlu0 %v417, 64
    %v468 = vpop.permute.xlu0 %467
    %469 = vrot.lane.b32.xlu0 %v418, 64
    %v470 = vpop.permute.xlu0 %469
    %471 = vrot.lane.b32.xlu0 %v419, 64
    %v472 = vpop.permute.xlu0 %471
    %473 = vrot.lane.b32.xlu0 %v420, 64
    %v474 = vpop.permute.xlu0 %473
    %475 = vrot.lane.b32.xlu0 %v421, 64
    %v476 = vpop.permute.xlu0 %475
    %477 = vrot.lane.b32.xlu0 %v422, 64
    %v478 = vpop.permute.xlu0 %477
    %479 = vrot.lane.b32.xlu0 %v423, 64
    %v480 = vpop.permute.xlu0 %479
    %481 = vrot.lane.b32.xlu0 %v424, 64
    %v482 = vpop.permute.xlu0 %481
    %483 = vrot.lane.b32.xlu0 %v425, 64
    %v484 = vpop.permute.xlu0 %483
    %485 = vrot.lane.b32.xlu0 %v426, 64
    %v486 = vpop.permute.xlu0 %485
    %487 = vrot.lane.b32.xlu0 %v427, 64
    %v488 = vpop.permute.xlu0 %487
    %489 = vrot.lane.b32.xlu0 %v428, 64
    %v490 = vpop.permute.xlu0 %489
    %491 = vrot.lane.b32.xlu0 %v429, 64
    %v492 = vpop.permute.xlu0 %491
    %493 = vrot.lane.b32.xlu0 %v430, 64
    %v494 = vpop.permute.xlu0 %493
    %495 = vrot.lane.b32.xlu0 %v431, 64
    %v496 = vpop.permute.xlu0 %495
    %513 = vst.msk [vmem:[%s4] sm:$0xf] %vm448, %v466
    %514 = vst.msk [vmem:[%s4 + $0x4] sm:$0xf] %vm448, %v468
    %515 = vst.msk [vmem:[%s4 + $0x8] sm:$0xf] %vm448, %v470
    %516 = vst.msk [vmem:[%s4 + $0xc] sm:$0xf] %vm448, %v472
    %517 = vst.msk [vmem:[%s4 + $0x10] sm:$0xf] %vm448, %v474
    %518 = vst.msk [vmem:[%s4 + $0x14] sm:$0xf] %vm448, %v476
    %519 = vst.msk [vmem:[%s4 + $0x18] sm:$0xf] %vm448, %v478
    %520 = vst.msk [vmem:[%s4 + $0x1c] sm:$0xf] %vm448, %v480
    %521 = vst.msk [vmem:[%s4 + $0x20] sm:$0xf] %vm448, %v482
    %522 = vst.msk [vmem:[%s4 + $0x24] sm:$0xf] %vm448, %v484
    %523 = vst.msk [vmem:[%s4 + $0x28] sm:$0xf] %vm448, %v486
    %524 = vst.msk [vmem:[%s4 + $0x2c] sm:$0xf] %vm448, %v488
    %525 = vst.msk [vmem:[%s4 + $0x30] sm:$0xf] %vm448, %v490
    %526 = vst.msk [vmem:[%s4 + $0x34] sm:$0xf] %vm448, %v492
    %527 = vst.msk [vmem:[%s4 + $0x38] sm:$0xf] %vm448, %v494
    %528 = vst.msk [vmem:[%s4 + $0x3c] sm:$0xf] %vm448, %v496
    %v529 = vpack.c.bf16 %v309, %v306
    %v530 = vpack.c.bf16 %v317, %v314
    %v531 = vpack.c.bf16 %v325, %v322
    %v532 = vpack.c.bf16 %v333, %v330
    %v533 = vpack.c.bf16 %v341, %v338
    %v534 = vpack.c.bf16 %v349, %v346
    %v535 = vpack.c.bf16 %v357, %v354
    %v536 = vpack.c.bf16 %v365, %v362
    %v545 = vunpack.c.l.b16 %v529
    %v546 = vunpack.c.h.b16 %v529
    %v547 = vunpack.c.l.b16 %v530
    %v548 = vunpack.c.h.b16 %v530
    %v549 = vunpack.c.l.b16 %v531
    %v550 = vunpack.c.h.b16 %v531
    %v551 = vunpack.c.l.b16 %v532
    %v552 = vunpack.c.h.b16 %v532
    %v553 = vunpack.c.l.b16 %v533
    %v554 = vunpack.c.h.b16 %v533
    %v555 = vunpack.c.l.b16 %v534
    %v556 = vunpack.c.h.b16 %v534
    %v557 = vunpack.c.l.b16 %v535
    %v558 = vunpack.c.h.b16 %v535
    %v559 = vunpack.c.l.b16 %v536
    %v560 = vunpack.c.h.b16 %v536
    %v561 = vpack.c.b16 %v545, %v545
    %v562 = vpack.c.b16 %v546, %v546
    %v563 = vpack.c.b16 %v547, %v547
    %v564 = vpack.c.b16 %v548, %v548
    %v565 = vpack.c.b16 %v549, %v549
    %v566 = vpack.c.b16 %v550, %v550
    %v567 = vpack.c.b16 %v551, %v551
    %v568 = vpack.c.b16 %v552, %v552
    %v569 = vpack.c.b16 %v553, %v553
    %v570 = vpack.c.b16 %v554, %v554
    %v571 = vpack.c.b16 %v555, %v555
    %v572 = vpack.c.b16 %v556, %v556
    %v573 = vpack.c.b16 %v557, %v557
    %v574 = vpack.c.b16 %v558, %v558
    %v575 = vpack.c.b16 %v559, %v559
    %v576 = vpack.c.b16 %v560, %v560
    %vm593 = vcmask 134144
    %594 = vst.msk [vmem:[%s5] sm:$0xf] %vm593, %v561
    %595 = vst.msk [vmem:[%s5 + $0x4] sm:$0xf] %vm593, %v562
    %596 = vst.msk [vmem:[%s5 + $0x8] sm:$0xf] %vm593, %v563
    %597 = vst.msk [vmem:[%s5 + $0xc] sm:$0xf] %vm593, %v564
    %598 = vst.msk [vmem:[%s5 + $0x10] sm:$0xf] %vm593, %v565
    %599 = vst.msk [vmem:[%s5 + $0x14] sm:$0xf] %vm593, %v566
    %600 = vst.msk [vmem:[%s5 + $0x18] sm:$0xf] %vm593, %v567
    %601 = vst.msk [vmem:[%s5 + $0x1c] sm:$0xf] %vm593, %v568
    %602 = vst.msk [vmem:[%s5 + $0x20] sm:$0xf] %vm593, %v569
    %603 = vst.msk [vmem:[%s5 + $0x24] sm:$0xf] %vm593, %v570
    %604 = vst.msk [vmem:[%s5 + $0x28] sm:$0xf] %vm593, %v571
    %605 = vst.msk [vmem:[%s5 + $0x2c] sm:$0xf] %vm593, %v572
    %606 = vst.msk [vmem:[%s5 + $0x30] sm:$0xf] %vm593, %v573
    %607 = vst.msk [vmem:[%s5 + $0x34] sm:$0xf] %vm593, %v574
    %608 = vst.msk [vmem:[%s5 + $0x38] sm:$0xf] %vm593, %v575
    %609 = vst.msk [vmem:[%s5 + $0x3c] sm:$0xf] %vm593, %v576
    %610 = vrot.lane.b32.xlu0 %v416, 112
    %v611 = vpop.permute.xlu0 %610
    %612 = vrot.lane.b32.xlu0 %v417, 112
    %v613 = vpop.permute.xlu0 %612
    %614 = vrot.lane.b32.xlu0 %v418, 112
    %v615 = vpop.permute.xlu0 %614
    %616 = vrot.lane.b32.xlu0 %v419, 112
    %v617 = vpop.permute.xlu0 %616
    %618 = vrot.lane.b32.xlu0 %v420, 112
    %v619 = vpop.permute.xlu0 %618
    %620 = vrot.lane.b32.xlu0 %v421, 112
    %v621 = vpop.permute.xlu0 %620
    %622 = vrot.lane.b32.xlu0 %v422, 112
    %v623 = vpop.permute.xlu0 %622
    %624 = vrot.lane.b32.xlu0 %v423, 112
    %v625 = vpop.permute.xlu0 %624
    %626 = vrot.lane.b32.xlu0 %v424, 112
    %v627 = vpop.permute.xlu0 %626
    %628 = vrot.lane.b32.xlu0 %v425, 112
    %v629 = vpop.permute.xlu0 %628
    %630 = vrot.lane.b32.xlu0 %v426, 112
    %v631 = vpop.permute.xlu0 %630
    %632 = vrot.lane.b32.xlu0 %v427, 112
    %v633 = vpop.permute.xlu0 %632
    %634 = vrot.lane.b32.xlu0 %v428, 112
    %v635 = vpop.permute.xlu0 %634
    %636 = vrot.lane.b32.xlu0 %v429, 112
    %v637 = vpop.permute.xlu0 %636
    %638 = vrot.lane.b32.xlu0 %v430, 112
    %v639 = vpop.permute.xlu0 %638
    %640 = vrot.lane.b32.xlu0 %v431, 112
    %v641 = vpop.permute.xlu0 %640
    %s658 = scalar_lea.vmem %s3, 64
    %659 = vst.msk [vmem:[%s658] sm:$0xf] %vm448, %v611
    %660 = vst.msk [vmem:[%s658 + $0x4] sm:$0xf] %vm448, %v613
    %661 = vst.msk [vmem:[%s658 + $0x8] sm:$0xf] %vm448, %v615
    %662 = vst.msk [vmem:[%s658 + $0xc] sm:$0xf] %vm448, %v617
    %663 = vst.msk [vmem:[%s658 + $0x10] sm:$0xf] %vm448, %v619
    %664 = vst.msk [vmem:[%s658 + $0x14] sm:$0xf] %vm448, %v621
    %665 = vst.msk [vmem:[%s658 + $0x18] sm:$0xf] %vm448, %v623
    %666 = vst.msk [vmem:[%s658 + $0x1c] sm:$0xf] %vm448, %v625
    %667 = vst.msk [vmem:[%s658 + $0x20] sm:$0xf] %vm448, %v627
    %668 = vst.msk [vmem:[%s658 + $0x24] sm:$0xf] %vm448, %v629
    %669 = vst.msk [vmem:[%s658 + $0x28] sm:$0xf] %vm448, %v631
    %670 = vst.msk [vmem:[%s658 + $0x2c] sm:$0xf] %vm448, %v633
    %671 = vst.msk [vmem:[%s658 + $0x30] sm:$0xf] %vm448, %v635
    %672 = vst.msk [vmem:[%s658 + $0x34] sm:$0xf] %vm448, %v637
    %673 = vst.msk [vmem:[%s658 + $0x38] sm:$0xf] %vm448, %v639
    %674 = vst.msk [vmem:[%s658 + $0x3c] sm:$0xf] %vm448, %v641
    %675 = vrot.lane.b32.xlu0 %v416, 48
    %v676 = vpop.permute.xlu0 %675
    %677 = vrot.lane.b32.xlu0 %v417, 48
    %v678 = vpop.permute.xlu0 %677
    %679 = vrot.lane.b32.xlu0 %v418, 48
    %v680 = vpop.permute.xlu0 %679
    %681 = vrot.lane.b32.xlu0 %v419, 48
    %v682 = vpop.permute.xlu0 %681
    %683 = vrot.lane.b32.xlu0 %v420, 48
    %v684 = vpop.permute.xlu0 %683
    %685 = vrot.lane.b32.xlu0 %v421, 48
    %v686 = vpop.permute.xlu0 %685
    %687 = vrot.lane.b32.xlu0 %v422, 48
    %v688 = vpop.permute.xlu0 %687
    %689 = vrot.lane.b32.xlu0 %v423, 48
    %v690 = vpop.permute.xlu0 %689
    %691 = vrot.lane.b32.xlu0 %v424, 48
    %v692 = vpop.permute.xlu0 %691
    %693 = vrot.lane.b32.xlu0 %v425, 48
    %v694 = vpop.permute.xlu0 %693
    %695 = vrot.lane.b32.xlu0 %v426, 48
    %v696 = vpop.permute.xlu0 %695
    %697 = vrot.lane.b32.xlu0 %v427, 48
    %v698 = vpop.permute.xlu0 %697
    %699 = vrot.lane.b32.xlu0 %v428, 48
    %v700 = vpop.permute.xlu0 %699
    %701 = vrot.lane.b32.xlu0 %v429, 48
    %v702 = vpop.permute.xlu0 %701
    %703 = vrot.lane.b32.xlu0 %v430, 48
    %v704 = vpop.permute.xlu0 %703
    %705 = vrot.lane.b32.xlu0 %v431, 48
    %v706 = vpop.permute.xlu0 %705
    %s723 = scalar_lea.vmem %s4, 64
    %724 = vst.msk [vmem:[%s723] sm:$0xf] %vm448, %v676
    %725 = vst.msk [vmem:[%s723 + $0x4] sm:$0xf] %vm448, %v678
    %726 = vst.msk [vmem:[%s723 + $0x8] sm:$0xf] %vm448, %v680
    %727 = vst.msk [vmem:[%s723 + $0xc] sm:$0xf] %vm448, %v682
    %728 = vst.msk [vmem:[%s723 + $0x10] sm:$0xf] %vm448, %v684
    %729 = vst.msk [vmem:[%s723 + $0x14] sm:$0xf] %vm448, %v686
    %730 = vst.msk [vmem:[%s723 + $0x18] sm:$0xf] %vm448, %v688
    %731 = vst.msk [vmem:[%s723 + $0x1c] sm:$0xf] %vm448, %v690
    %732 = vst.msk [vmem:[%s723 + $0x20] sm:$0xf] %vm448, %v692
    %733 = vst.msk [vmem:[%s723 + $0x24] sm:$0xf] %vm448, %v694
    %734 = vst.msk [vmem:[%s723 + $0x28] sm:$0xf] %vm448, %v696
    %735 = vst.msk [vmem:[%s723 + $0x2c] sm:$0xf] %vm448, %v698
    %736 = vst.msk [vmem:[%s723 + $0x30] sm:$0xf] %vm448, %v700
    %737 = vst.msk [vmem:[%s723 + $0x34] sm:$0xf] %vm448, %v702
    %738 = vst.msk [vmem:[%s723 + $0x38] sm:$0xf] %vm448, %v704
    %739 = vst.msk [vmem:[%s723 + $0x3c] sm:$0xf] %vm448, %v706
    %740 = vrot.lane.b32.xlu0 %v561, 111
    %v741 = vpop.permute.xlu0 %740
    %742 = vrot.lane.b32.xlu0 %v562, 111
    %v743 = vpop.permute.xlu0 %742
    %744 = vrot.lane.b32.xlu0 %v563, 111
    %v745 = vpop.permute.xlu0 %744
    %746 = vrot.lane.b32.xlu0 %v564, 111
    %v747 = vpop.permute.xlu0 %746
    %748 = vrot.lane.b32.xlu0 %v565, 111
    %v749 = vpop.permute.xlu0 %748
    %750 = vrot.lane.b32.xlu0 %v566, 111
    %v751 = vpop.permute.xlu0 %750
    %752 = vrot.lane.b32.xlu0 %v567, 111
    %v753 = vpop.permute.xlu0 %752
    %754 = vrot.lane.b32.xlu0 %v568, 111
    %v755 = vpop.permute.xlu0 %754
    %756 = vrot.lane.b32.xlu0 %v569, 111
    %v757 = vpop.permute.xlu0 %756
    %758 = vrot.lane.b32.xlu0 %v570, 111
    %v759 = vpop.permute.xlu0 %758
    %760 = vrot.lane.b32.xlu0 %v571, 111
    %v761 = vpop.permute.xlu0 %760
    %762 = vrot.lane.b32.xlu0 %v572, 111
    %v763 = vpop.permute.xlu0 %762
    %764 = vrot.lane.b32.xlu0 %v573, 111
    %v765 = vpop.permute.xlu0 %764
    %766 = vrot.lane.b32.xlu0 %v574, 111
    %v767 = vpop.permute.xlu0 %766
    %768 = vrot.lane.b32.xlu0 %v575, 111
    %v769 = vpop.permute.xlu0 %768
    %770 = vrot.lane.b32.xlu0 %v576, 111
    %v771 = vpop.permute.xlu0 %770
    %s788 = scalar_lea.vmem %s5, 64
    %789 = vst.msk [vmem:[%s788] sm:$0xf] %vm593, %v741
    %790 = vst.msk [vmem:[%s788 + $0x4] sm:$0xf] %vm593, %v743
    %791 = vst.msk [vmem:[%s788 + $0x8] sm:$0xf] %vm593, %v745
    %792 = vst.msk [vmem:[%s788 + $0xc] sm:$0xf] %vm593, %v747
    %793 = vst.msk [vmem:[%s788 + $0x10] sm:$0xf] %vm593, %v749
    %794 = vst.msk [vmem:[%s788 + $0x14] sm:$0xf] %vm593, %v751
    %795 = vst.msk [vmem:[%s788 + $0x18] sm:$0xf] %vm593, %v753
    %796 = vst.msk [vmem:[%s788 + $0x1c] sm:$0xf] %vm593, %v755
    %797 = vst.msk [vmem:[%s788 + $0x20] sm:$0xf] %vm593, %v757
    %798 = vst.msk [vmem:[%s788 + $0x24] sm:$0xf] %vm593, %v759
    %799 = vst.msk [vmem:[%s788 + $0x28] sm:$0xf] %vm593, %v761
    %800 = vst.msk [vmem:[%s788 + $0x2c] sm:$0xf] %vm593, %v763
    %801 = vst.msk [vmem:[%s788 + $0x30] sm:$0xf] %vm593, %v765
    %802 = vst.msk [vmem:[%s788 + $0x34] sm:$0xf] %vm593, %v767
    %803 = vst.msk [vmem:[%s788 + $0x38] sm:$0xf] %vm593, %v769
    %804 = vst.msk [vmem:[%s788 + $0x3c] sm:$0xf] %vm593, %v771
    %805 = vrot.lane.b32.xlu0 %v416, 96
    %v806 = vpop.permute.xlu0 %805
    %807 = vrot.lane.b32.xlu0 %v417, 96
    %v808 = vpop.permute.xlu0 %807
    %809 = vrot.lane.b32.xlu0 %v418, 96
    %v810 = vpop.permute.xlu0 %809
    %811 = vrot.lane.b32.xlu0 %v419, 96
    %v812 = vpop.permute.xlu0 %811
    %813 = vrot.lane.b32.xlu0 %v420, 96
    %v814 = vpop.permute.xlu0 %813
    %815 = vrot.lane.b32.xlu0 %v421, 96
    %v816 = vpop.permute.xlu0 %815
    %817 = vrot.lane.b32.xlu0 %v422, 96
    %v818 = vpop.permute.xlu0 %817
    %819 = vrot.lane.b32.xlu0 %v423, 96
    %v820 = vpop.permute.xlu0 %819
    %821 = vrot.lane.b32.xlu0 %v424, 96
    %v822 = vpop.permute.xlu0 %821
    %823 = vrot.lane.b32.xlu0 %v425, 96
    %v824 = vpop.permute.xlu0 %823
    %825 = vrot.lane.b32.xlu0 %v426, 96
    %v826 = vpop.permute.xlu0 %825
    %827 = vrot.lane.b32.xlu0 %v427, 96
    %v828 = vpop.permute.xlu0 %827
    %829 = vrot.lane.b32.xlu0 %v428, 96
    %v830 = vpop.permute.xlu0 %829
    %831 = vrot.lane.b32.xlu0 %v429, 96
    %v832 = vpop.permute.xlu0 %831
    %833 = vrot.lane.b32.xlu0 %v430, 96
    %v834 = vpop.permute.xlu0 %833
    %835 = vrot.lane.b32.xlu0 %v431, 96
    %v836 = vpop.permute.xlu0 %835
    %s853 = scalar_lea.vmem %s3, 128
    %854 = vst.msk [vmem:[%s853] sm:$0xf] %vm448, %v806
    %855 = vst.msk [vmem:[%s853 + $0x4] sm:$0xf] %vm448, %v808
    %856 = vst.msk [vmem:[%s853 + $0x8] sm:$0xf] %vm448, %v810
    %857 = vst.msk [vmem:[%s853 + $0xc] sm:$0xf] %vm448, %v812
    %858 = vst.msk [vmem:[%s853 + $0x10] sm:$0xf] %vm448, %v814
    %859 = vst.msk [vmem:[%s853 + $0x14] sm:$0xf] %vm448, %v816
    %860 = vst.msk [vmem:[%s853 + $0x18] sm:$0xf] %vm448, %v818
    %861 = vst.msk [vmem:[%s853 + $0x1c] sm:$0xf] %vm448, %v820
    %862 = vst.msk [vmem:[%s853 + $0x20] sm:$0xf] %vm448, %v822
    %863 = vst.msk [vmem:[%s853 + $0x24] sm:$0xf] %vm448, %v824
    %864 = vst.msk [vmem:[%s853 + $0x28] sm:$0xf] %vm448, %v826
    %865 = vst.msk [vmem:[%s853 + $0x2c] sm:$0xf] %vm448, %v828
    %866 = vst.msk [vmem:[%s853 + $0x30] sm:$0xf] %vm448, %v830
    %867 = vst.msk [vmem:[%s853 + $0x34] sm:$0xf] %vm448, %v832
    %868 = vst.msk [vmem:[%s853 + $0x38] sm:$0xf] %vm448, %v834
    %869 = vst.msk [vmem:[%s853 + $0x3c] sm:$0xf] %vm448, %v836
    %870 = vrot.lane.b32.xlu0 %v416, 32
    %v871 = vpop.permute.xlu0 %870
    %872 = vrot.lane.b32.xlu0 %v417, 32
    %v873 = vpop.permute.xlu0 %872
    %874 = vrot.lane.b32.xlu0 %v418, 32
    %v875 = vpop.permute.xlu0 %874
    %876 = vrot.lane.b32.xlu0 %v419, 32
    %v877 = vpop.permute.xlu0 %876
    %878 = vrot.lane.b32.xlu0 %v420, 32
    %v879 = vpop.permute.xlu0 %878
    %880 = vrot.lane.b32.xlu0 %v421, 32
    %v881 = vpop.permute.xlu0 %880
    %882 = vrot.lane.b32.xlu0 %v422, 32
    %v883 = vpop.permute.xlu0 %882
    %884 = vrot.lane.b32.xlu0 %v423, 32
    %v885 = vpop.permute.xlu0 %884
    %886 = vrot.lane.b32.xlu0 %v424, 32
    %v887 = vpop.permute.xlu0 %886
    %888 = vrot.lane.b32.xlu0 %v425, 32
    %v889 = vpop.permute.xlu0 %888
    %890 = vrot.lane.b32.xlu0 %v426, 32
    %v891 = vpop.permute.xlu0 %890
    %892 = vrot.lane.b32.xlu0 %v427, 32
    %v893 = vpop.permute.xlu0 %892
    %894 = vrot.lane.b32.xlu0 %v428, 32
    %v895 = vpop.permute.xlu0 %894
    %896 = vrot.lane.b32.xlu0 %v429, 32
    %v897 = vpop.permute.xlu0 %896
    %898 = vrot.lane.b32.xlu0 %v430, 32
    %v899 = vpop.permute.xlu0 %898
    %900 = vrot.lane.b32.xlu0 %v431, 32
    %v901 = vpop.permute.xlu0 %900
    %s918 = scalar_lea.vmem %s4, 128
    %919 = vst.msk [vmem:[%s918] sm:$0xf] %vm448, %v871
    %920 = vst.msk [vmem:[%s918 + $0x4] sm:$0xf] %vm448, %v873
    %921 = vst.msk [vmem:[%s918 + $0x8] sm:$0xf] %vm448, %v875
    %922 = vst.msk [vmem:[%s918 + $0xc] sm:$0xf] %vm448, %v877
    %923 = vst.msk [vmem:[%s918 + $0x10] sm:$0xf] %vm448, %v879
    %924 = vst.msk [vmem:[%s918 + $0x14] sm:$0xf] %vm448, %v881
    %925 = vst.msk [vmem:[%s918 + $0x18] sm:$0xf] %vm448, %v883
    %926 = vst.msk [vmem:[%s918 + $0x1c] sm:$0xf] %vm448, %v885
    %927 = vst.msk [vmem:[%s918 + $0x20] sm:$0xf] %vm448, %v887
    %928 = vst.msk [vmem:[%s918 + $0x24] sm:$0xf] %vm448, %v889
    %929 = vst.msk [vmem:[%s918 + $0x28] sm:$0xf] %vm448, %v891
    %930 = vst.msk [vmem:[%s918 + $0x2c] sm:$0xf] %vm448, %v893
    %931 = vst.msk [vmem:[%s918 + $0x30] sm:$0xf] %vm448, %v895
    %932 = vst.msk [vmem:[%s918 + $0x34] sm:$0xf] %vm448, %v897
    %933 = vst.msk [vmem:[%s918 + $0x38] sm:$0xf] %vm448, %v899
    %934 = vst.msk [vmem:[%s918 + $0x3c] sm:$0xf] %vm448, %v901
    %935 = vrot.lane.b32.xlu0 %v561, 94
    %v936 = vpop.permute.xlu0 %935
    %937 = vrot.lane.b32.xlu0 %v562, 94
    %v938 = vpop.permute.xlu0 %937
    %939 = vrot.lane.b32.xlu0 %v563, 94
    %v940 = vpop.permute.xlu0 %939
    %941 = vrot.lane.b32.xlu0 %v564, 94
    %v942 = vpop.permute.xlu0 %941
    %943 = vrot.lane.b32.xlu0 %v565, 94
    %v944 = vpop.permute.xlu0 %943
    %945 = vrot.lane.b32.xlu0 %v566, 94
    %v946 = vpop.permute.xlu0 %945
    %947 = vrot.lane.b32.xlu0 %v567, 94
    %v948 = vpop.permute.xlu0 %947
    %949 = vrot.lane.b32.xlu0 %v568, 94
    %v950 = vpop.permute.xlu0 %949
    %951 = vrot.lane.b32.xlu0 %v569, 94
    %v952 = vpop.permute.xlu0 %951
    %953 = vrot.lane.b32.xlu0 %v570, 94
    %v954 = vpop.permute.xlu0 %953
    %955 = vrot.lane.b32.xlu0 %v571, 94
    %v956 = vpop.permute.xlu0 %955
    %957 = vrot.lane.b32.xlu0 %v572, 94
    %v958 = vpop.permute.xlu0 %957
    %959 = vrot.lane.b32.xlu0 %v573, 94
    %v960 = vpop.permute.xlu0 %959
    %961 = vrot.lane.b32.xlu0 %v574, 94
    %v962 = vpop.permute.xlu0 %961
    %963 = vrot.lane.b32.xlu0 %v575, 94
    %v964 = vpop.permute.xlu0 %963
    %965 = vrot.lane.b32.xlu0 %v576, 94
    %v966 = vpop.permute.xlu0 %965
    %s983 = scalar_lea.vmem %s5, 128
    %984 = vst.msk [vmem:[%s983] sm:$0xf] %vm593, %v936
    %985 = vst.msk [vmem:[%s983 + $0x4] sm:$0xf] %vm593, %v938
    %986 = vst.msk [vmem:[%s983 + $0x8] sm:$0xf] %vm593, %v940
    %987 = vst.msk [vmem:[%s983 + $0xc] sm:$0xf] %vm593, %v942
    %988 = vst.msk [vmem:[%s983 + $0x10] sm:$0xf] %vm593, %v944
    %989 = vst.msk [vmem:[%s983 + $0x14] sm:$0xf] %vm593, %v946
    %990 = vst.msk [vmem:[%s983 + $0x18] sm:$0xf] %vm593, %v948
    %991 = vst.msk [vmem:[%s983 + $0x1c] sm:$0xf] %vm593, %v950
    %992 = vst.msk [vmem:[%s983 + $0x20] sm:$0xf] %vm593, %v952
    %993 = vst.msk [vmem:[%s983 + $0x24] sm:$0xf] %vm593, %v954
    %994 = vst.msk [vmem:[%s983 + $0x28] sm:$0xf] %vm593, %v956
    %995 = vst.msk [vmem:[%s983 + $0x2c] sm:$0xf] %vm593, %v958
    %996 = vst.msk [vmem:[%s983 + $0x30] sm:$0xf] %vm593, %v960
    %997 = vst.msk [vmem:[%s983 + $0x34] sm:$0xf] %vm593, %v962
    %998 = vst.msk [vmem:[%s983 + $0x38] sm:$0xf] %vm593, %v964
    %999 = vst.msk [vmem:[%s983 + $0x3c] sm:$0xf] %vm593, %v966
    %1000 = vrot.lane.b32.xlu0 %v416, 80
    %v1001 = vpop.permute.xlu0 %1000
    %1002 = vrot.lane.b32.xlu0 %v417, 80
    %v1003 = vpop.permute.xlu0 %1002
    %1004 = vrot.lane.b32.xlu0 %v418, 80
    %v1005 = vpop.permute.xlu0 %1004
    %1006 = vrot.lane.b32.xlu0 %v419, 80
    %v1007 = vpop.permute.xlu0 %1006
    %1008 = vrot.lane.b32.xlu0 %v420, 80
    %v1009 = vpop.permute.xlu0 %1008
    %1010 = vrot.lane.b32.xlu0 %v421, 80
    %v1011 = vpop.permute.xlu0 %1010
    %1012 = vrot.lane.b32.xlu0 %v422, 80
    %v1013 = vpop.permute.xlu0 %1012
    %1014 = vrot.lane.b32.xlu0 %v423, 80
    %v1015 = vpop.permute.xlu0 %1014
    %1016 = vrot.lane.b32.xlu0 %v424, 80
    %v1017 = vpop.permute.xlu0 %1016
    %1018 = vrot.lane.b32.xlu0 %v425, 80
    %v1019 = vpop.permute.xlu0 %1018
    %1020 = vrot.lane.b32.xlu0 %v426, 80
    %v1021 = vpop.permute.xlu0 %1020
    %1022 = vrot.lane.b32.xlu0 %v427, 80
    %v1023 = vpop.permute.xlu0 %1022
    %1024 = vrot.lane.b32.xlu0 %v428, 80
    %v1025 = vpop.permute.xlu0 %1024
    %1026 = vrot.lane.b32.xlu0 %v429, 80
    %v1027 = vpop.permute.xlu0 %1026
    %1028 = vrot.lane.b32.xlu0 %v430, 80
    %v1029 = vpop.permute.xlu0 %1028
    %1030 = vrot.lane.b32.xlu0 %v431, 80
    %v1031 = vpop.permute.xlu0 %1030
    %s1048 = scalar_lea.vmem %s3, 192
    %1049 = vst.msk [vmem:[%s1048] sm:$0xf] %vm448, %v1001
    %1050 = vst.msk [vmem:[%s1048 + $0x4] sm:$0xf] %vm448, %v1003
    %1051 = vst.msk [vmem:[%s1048 + $0x8] sm:$0xf] %vm448, %v1005
    %1052 = vst.msk [vmem:[%s1048 + $0xc] sm:$0xf] %vm448, %v1007
    %1053 = vst.msk [vmem:[%s1048 + $0x10] sm:$0xf] %vm448, %v1009
    %1054 = vst.msk [vmem:[%s1048 + $0x14] sm:$0xf] %vm448, %v1011
    %1055 = vst.msk [vmem:[%s1048 + $0x18] sm:$0xf] %vm448, %v1013
    %1056 = vst.msk [vmem:[%s1048 + $0x1c] sm:$0xf] %vm448, %v1015
    %1057 = vst.msk [vmem:[%s1048 + $0x20] sm:$0xf] %vm448, %v1017
    %1058 = vst.msk [vmem:[%s1048 + $0x24] sm:$0xf] %vm448, %v1019
    %1059 = vst.msk [vmem:[%s1048 + $0x28] sm:$0xf] %vm448, %v1021
    %1060 = vst.msk [vmem:[%s1048 + $0x2c] sm:$0xf] %vm448, %v1023
    %1061 = vst.msk [vmem:[%s1048 + $0x30] sm:$0xf] %vm448, %v1025
    %1062 = vst.msk [vmem:[%s1048 + $0x34] sm:$0xf] %vm448, %v1027
    %1063 = vst.msk [vmem:[%s1048 + $0x38] sm:$0xf] %vm448, %v1029
    %1064 = vst.msk [vmem:[%s1048 + $0x3c] sm:$0xf] %vm448, %v1031
    %1065 = vrot.lane.b32.xlu0 %v416, 16
    %v1066 = vpop.permute.xlu0 %1065
    %1067 = vrot.lane.b32.xlu0 %v417, 16
    %v1068 = vpop.permute.xlu0 %1067
    %1069 = vrot.lane.b32.xlu0 %v418, 16
    %v1070 = vpop.permute.xlu0 %1069
    %1071 = vrot.lane.b32.xlu0 %v419, 16
    %v1072 = vpop.permute.xlu0 %1071
    %1073 = vrot.lane.b32.xlu0 %v420, 16
    %v1074 = vpop.permute.xlu0 %1073
    %1075 = vrot.lane.b32.xlu0 %v421, 16
    %v1076 = vpop.permute.xlu0 %1075
    %1077 = vrot.lane.b32.xlu0 %v422, 16
    %v1078 = vpop.permute.xlu0 %1077
    %1079 = vrot.lane.b32.xlu0 %v423, 16
    %v1080 = vpop.permute.xlu0 %1079
    %1081 = vrot.lane.b32.xlu0 %v424, 16
    %v1082 = vpop.permute.xlu0 %1081
    %1083 = vrot.lane.b32.xlu0 %v425, 16
    %v1084 = vpop.permute.xlu0 %1083
    %1085 = vrot.lane.b32.xlu0 %v426, 16
    %v1086 = vpop.permute.xlu0 %1085
    %1087 = vrot.lane.b32.xlu0 %v427, 16
    %v1088 = vpop.permute.xlu0 %1087
    %1089 = vrot.lane.b32.xlu0 %v428, 16
    %v1090 = vpop.permute.xlu0 %1089
    %1091 = vrot.lane.b32.xlu0 %v429, 16
    %v1092 = vpop.permute.xlu0 %1091
    %1093 = vrot.lane.b32.xlu0 %v430, 16
    %v1094 = vpop.permute.xlu0 %1093
    %1095 = vrot.lane.b32.xlu0 %v431, 16
    %v1096 = vpop.permute.xlu0 %1095
    %s1113 = scalar_lea.vmem %s4, 192
    %1114 = vst.msk [vmem:[%s1113] sm:$0xf] %vm448, %v1066
    %1115 = vst.msk [vmem:[%s1113 + $0x4] sm:$0xf] %vm448, %v1068
    %1116 = vst.msk [vmem:[%s1113 + $0x8] sm:$0xf] %vm448, %v1070
    %1117 = vst.msk [vmem:[%s1113 + $0xc] sm:$0xf] %vm448, %v1072
    %1118 = vst.msk [vmem:[%s1113 + $0x10] sm:$0xf] %vm448, %v1074
    %1119 = vst.msk [vmem:[%s1113 + $0x14] sm:$0xf] %vm448, %v1076
    %1120 = vst.msk [vmem:[%s1113 + $0x18] sm:$0xf] %vm448, %v1078
    %1121 = vst.msk [vmem:[%s1113 + $0x1c] sm:$0xf] %vm448, %v1080
    %1122 = vst.msk [vmem:[%s1113 + $0x20] sm:$0xf] %vm448, %v1082
    %1123 = vst.msk [vmem:[%s1113 + $0x24] sm:$0xf] %vm448, %v1084
    %1124 = vst.msk [vmem:[%s1113 + $0x28] sm:$0xf] %vm448, %v1086
    %1125 = vst.msk [vmem:[%s1113 + $0x2c] sm:$0xf] %vm448, %v1088
    %1126 = vst.msk [vmem:[%s1113 + $0x30] sm:$0xf] %vm448, %v1090
    %1127 = vst.msk [vmem:[%s1113 + $0x34] sm:$0xf] %vm448, %v1092
    %1128 = vst.msk [vmem:[%s1113 + $0x38] sm:$0xf] %vm448, %v1094
    %1129 = vst.msk [vmem:[%s1113 + $0x3c] sm:$0xf] %vm448, %v1096
    %1130 = vrot.lane.b32.xlu0 %v561, 77
    %v1131 = vpop.permute.xlu0 %1130
    %1132 = vrot.lane.b32.xlu0 %v562, 77
    %v1133 = vpop.permute.xlu0 %1132
    %1134 = vrot.lane.b32.xlu0 %v563, 77
    %v1135 = vpop.permute.xlu0 %1134
    %1136 = vrot.lane.b32.xlu0 %v564, 77
    %v1137 = vpop.permute.xlu0 %1136
    %1138 = vrot.lane.b32.xlu0 %v565, 77
    %v1139 = vpop.permute.xlu0 %1138
    %1140 = vrot.lane.b32.xlu0 %v566, 77
    %v1141 = vpop.permute.xlu0 %1140
    %1142 = vrot.lane.b32.xlu0 %v567, 77
    %v1143 = vpop.permute.xlu0 %1142
    %1144 = vrot.lane.b32.xlu0 %v568, 77
    %v1145 = vpop.permute.xlu0 %1144
    %1146 = vrot.lane.b32.xlu0 %v569, 77
    %v1147 = vpop.permute.xlu0 %1146
    %1148 = vrot.lane.b32.xlu0 %v570, 77
    %v1149 = vpop.permute.xlu0 %1148
    %1150 = vrot.lane.b32.xlu0 %v571, 77
    %v1151 = vpop.permute.xlu0 %1150
    %1152 = vrot.lane.b32.xlu0 %v572, 77
    %v1153 = vpop.permute.xlu0 %1152
    %1154 = vrot.lane.b32.xlu0 %v573, 77
    %v1155 = vpop.permute.xlu0 %1154
    %1156 = vrot.lane.b32.xlu0 %v574, 77
    %v1157 = vpop.permute.xlu0 %1156
    %1158 = vrot.lane.b32.xlu0 %v575, 77
    %v1159 = vpop.permute.xlu0 %1158
    %1160 = vrot.lane.b32.xlu0 %v576, 77
    %v1161 = vpop.permute.xlu0 %1160
    %s1178 = scalar_lea.vmem %s5, 192
    %1179 = vst.msk [vmem:[%s1178] sm:$0xf] %vm593, %v1131
    %1180 = vst.msk [vmem:[%s1178 + $0x4] sm:$0xf] %vm593, %v1133
    %1181 = vst.msk [vmem:[%s1178 + $0x8] sm:$0xf] %vm593, %v1135
    %1182 = vst.msk [vmem:[%s1178 + $0xc] sm:$0xf] %vm593, %v1137
    %1183 = vst.msk [vmem:[%s1178 + $0x10] sm:$0xf] %vm593, %v1139
    %1184 = vst.msk [vmem:[%s1178 + $0x14] sm:$0xf] %vm593, %v1141
    %1185 = vst.msk [vmem:[%s1178 + $0x18] sm:$0xf] %vm593, %v1143
    %1186 = vst.msk [vmem:[%s1178 + $0x1c] sm:$0xf] %vm593, %v1145
    %1187 = vst.msk [vmem:[%s1178 + $0x20] sm:$0xf] %vm593, %v1147
    %1188 = vst.msk [vmem:[%s1178 + $0x24] sm:$0xf] %vm593, %v1149
    %1189 = vst.msk [vmem:[%s1178 + $0x28] sm:$0xf] %vm593, %v1151
    %1190 = vst.msk [vmem:[%s1178 + $0x2c] sm:$0xf] %vm593, %v1153
    %1191 = vst.msk [vmem:[%s1178 + $0x30] sm:$0xf] %vm593, %v1155
    %1192 = vst.msk [vmem:[%s1178 + $0x34] sm:$0xf] %vm593, %v1157
    %1193 = vst.msk [vmem:[%s1178 + $0x38] sm:$0xf] %vm593, %v1159
    %1194 = vst.msk [vmem:[%s1178 + $0x3c] sm:$0xf] %vm593, %v1161
    // Predicated region
    $region14: #{tpu_custom_call.1} parent=1 // pred_check
      _
    $region15: #{tpu_custom_call.1} parent=1 // pred_check_branch
      %1196 = sbr.rel (0) target = $region17
    $region16: #{tpu_custom_call.1} parent=1 // pred_region
      _
    $region17: #{tpu_custom_call.1} parent=1 // pred_fallthru
      _
    // Predicated region
    $region18: #{tpu_custom_call.1} parent=1 // pred_check
      _
    $region19: #{tpu_custom_call.1} parent=1 // pred_check_branch
      %1198 = sbr.rel (0) target = $region21
    $region20: #{tpu_custom_call.1} parent=1 // pred_region
      _
    $region21: #{tpu_custom_call.1} parent=1 // pred_fallthru
      _
    // Predicated region
    $region22: #{tpu_custom_call.1} parent=1 // pred_check
      _
    $region23: #{tpu_custom_call.1} parent=1 // pred_check_branch
      %1200 = sbr.rel (0) target = $region25
    $region24: #{tpu_custom_call.1} parent=1 // pred_region
      _
    $region25: #{tpu_custom_call.1} parent=1 // pred_fallthru
      _
    // Predicated region
    $region26: #{tpu_custom_call.1} parent=1 // pred_check
      _
    $region27: #{tpu_custom_call.1} parent=1 // pred_check_branch
      %1202 = sbr.rel (0) target = $region29
    $region28: #{tpu_custom_call.1} parent=1 // pred_region
      %s1204 = ssub.s32 2048, 2048
      %1205 = vsyncadd [#allocation3], %s1204
      %s1206 = sshll.u32 [#allocation2], 4
      %s1207 = int_to_ptr.vmem [resolvable:$true] %s1206
      %1212 = dma.vmem_to_hbm [thread:$0]  %s1207, 2048, %s6, [#allocation3], 128, 128, 8
    $region29: #{tpu_custom_call.1} parent=1 // pred_fallthru
      _
    // Predicated region
    $region30: #{tpu_custom_call.1} parent=1 // pred_check
      _
    $region31: #{tpu_custom_call.1} parent=1 // pred_check_branch
      %1214 = sbr.rel (0) target = $region33
    $region32: #{tpu_custom_call.1} parent=1 // pred_region
      _
    $region33: #{tpu_custom_call.1} parent=1 // pred_fallthru
      _
    // Predicated region
    $region34: #{tpu_custom_call.1} parent=1 // pred_check
      _
    $region35: #{tpu_custom_call.1} parent=1 // pred_check_branch
      %1216 = sbr.rel (0) target = $region37
    $region36: #{tpu_custom_call.1} parent=1 // pred_region
      _
    $region37: #{tpu_custom_call.1} parent=1 // pred_fallthru
      _
    // Predicated region
    $region38: #{tpu_custom_call.1} parent=1 // pred_check
      _
    $region39: #{tpu_custom_call.1} parent=1 // pred_check_branch
      %1218 = sbr.rel (0) target = $region41
    $region40: #{tpu_custom_call.1} parent=1 // pred_region
      _
    $region41: #{tpu_custom_call.1} parent=1 // pred_fallthru
      _
    // Predicated region
    $region42: #{tpu_custom_call.1} parent=1 // pred_check
      _
    $region43: #{tpu_custom_call.1} parent=1 // pred_check_branch
      %1220 = sbr.rel (0) target = $region45
    $region44: #{tpu_custom_call.1} parent=1 // pred_region
      %1221 = dma.done [#allocation3], 2048
    $region45: #{tpu_custom_call.1} parent=1 // pred_fallthru
      _
    %1222 = vsyncpa [#allocation3], 1

</llo_original>
